<compile_context>
chip_gen: v6e
topology: v6e:2x2x1
jax: 0.10.0
libtpu: 0.0.40
codegen_flags: <defaults>
</compile_context>

<pallas_src>
import math

import jax
import jax.numpy as jnp
from jax import lax
from jax.experimental import pallas as pl
from jax.experimental.pallas import tpu as pltpu

HIDDEN_SIZE = 48
ATTN_HEAD_SIZE = 16
DROPOUT_PROB = 0.0  # nn.Dropout(0.0) == identity


def _sdpa_kernel(x_ref, wqkv_ref, out_ref, probs_ref):
    # x_ref:    (B*S, H+1)  -- trailing ones column for the bias fold
    # wqkv_ref: (H+1, 3A)   -- [Wq/sqrt(A) | Wk | Wv], bias row last
    # out_ref:  (B, S, A) ; probs_ref: (B, S, S)
    b_total, s, a = out_ref.shape
    hp = lax.Precision.HIGHEST

    # Single fused QKV projection for all B*S rows: one MXU push, bias included.
    qkv = jnp.dot(x_ref[...], wqkv_ref[...],
                  preferred_element_type=jnp.float32, precision=hp)   # (B*S, 3A)

    # B is tiny (2) -> unrolled Python loop; every slice is static and
    # sublane-aligned (row offsets are multiples of 8).
    for b in range(b_total):
        rows = qkv[b * s:(b + 1) * s]                    # (S, 3A)
        q = rows[:, 0 * a:1 * a]                         # already scaled by 1/sqrt(A)
        k = rows[:, 1 * a:2 * a]
        v = rows[:, 2 * a:3 * a]

        # scores = q @ k^T via dot_general contracting the shared head axis
        # (no materialized transpose of k).
        scores = lax.dot_general(q, k, (((1,), (1,)), ((), ())),
                                 preferred_element_type=jnp.float32,
                                 precision=hp)           # (S, S)

        # Numerically stable softmax with EXACT division (returned probs must
        # match exact softmax: rows sum to 1).
        m = jnp.max(scores, axis=-1, keepdims=True)
        e = jnp.exp(scores - m)
        probs = e / jnp.sum(e, axis=-1, keepdims=True)   # (S, S)

        out = jnp.dot(probs, v, preferred_element_type=jnp.float32,
                      precision=hp)                      # (S, A)

        out_ref[b] = out
        probs_ref[b] = probs


@jax.jit
def scaled_dot_product_attention(x, wqkv_aug):
    """x: (B, S, H) f32.  wqkv_aug: (H+1, 3A) fused [Wq/sqrt(A)|Wk|Wv] with the
    (pre-scaled) biases as the last row.

    Returns (attention_output (B, S, A), attention_probs (B, S, S)).
    """
    B, S, H = x.shape
    A = wqkv_aug.shape[1] // 3
    assert wqkv_aug.shape[0] == H + 1

    # Flatten batches and append the bias ones-column.  This stays inside the
    # same jit as the pallas_call, so it is a single tiny fused on-device op.
    x_aug = jnp.concatenate(
        [x.reshape(B * S, H), jnp.ones((B * S, 1), x.dtype)], axis=-1)

    out, probs = pl.pallas_call(
        _sdpa_kernel,
        out_shape=(jax.ShapeDtypeStruct((B, S, A), jnp.float32),
                   jax.ShapeDtypeStruct((B, S, S), jnp.float32)),
        # Single invocation (no grid): whole arrays resident in VMEM.
        in_specs=[pl.BlockSpec(memory_space=pltpu.MemorySpace.VMEM),
                  pl.BlockSpec(memory_space=pltpu.MemorySpace.VMEM)],
        out_specs=(pl.BlockSpec(memory_space=pltpu.MemorySpace.VMEM),
                   pl.BlockSpec(memory_space=pltpu.MemorySpace.VMEM)),
    )(x_aug, wqkv_aug)
    return out, probs


def _init_linear_params(key, in_features, out_features):
    # Deterministic init mimicking nn.Linear default: U(-1/sqrt(fan_in), +...).
    kw, kb = jax.random.split(key)
    bound = 1.0 / math.sqrt(in_features)
    w = jax.random.uniform(kw, (out_features, in_features), jnp.float32,
                           minval=-bound, maxval=bound)
    b = jax.random.uniform(kb, (out_features,), jnp.float32,
                           minval=-bound, maxval=bound)
    # Pre-transposed weight (in, out) and bias (1, out).
    return w.T, b.reshape(1, out_features)


def fuse_qkv_params(wq_t, bq, wk_t, bk, wv_t, bv):
    """One-time parameter prep: concat Q/K/V, fold 1/sqrt(A) into Q (exact for
    A=16), and append the bias row so the bias rides the matmul."""
    a = wq_t.shape[1]
    scale = 1.0 / math.sqrt(a)
    w = jnp.concatenate([wq_t * scale, wk_t, wv_t], axis=1)   # (H, 3A)
    b = jnp.concatenate([bq * scale, bk, bv], axis=1)         # (1, 3A)
    return jnp.concatenate([w, b], axis=0)                    # (H+1, 3A)


if __name__ == "__main__":
    key = jax.random.PRNGKey(0)
    k_x, k_q, k_k, k_v = jax.random.split(key, 4)

    B, S, H, A = 2, 8, HIDDEN_SIZE, ATTN_HEAD_SIZE
    x = jax.random.normal(k_x, (B, S, H), jnp.float32)

    wq_t, bq = _init_linear_params(k_q, H, A)
    wk_t, bk = _init_linear_params(k_k, H, A)
    wv_t, bv = _init_linear_params(k_v, H, A)
    wqkv_aug = fuse_qkv_params(wq_t, bq, wk_t, bk, wv_t, bv)

    out, probs = scaled_dot_product_attention(x, wqkv_aug)
    jax.block_until_ready((out, probs))

    # Reference in plain JAX using the original (unfused, unscaled) params —
    # this also validates the QKV fusion, the 1/sqrt(A) fold and the bias fold.
    # HIGHEST precision so the reference matmuls are f32-accurate on TPU.
    hp = jax.lax.Precision.HIGHEST
    q_ref = jnp.matmul(x, wq_t, precision=hp) + bq
    k_ref = jnp.matmul(x, wk_t, precision=hp) + bk
    v_ref = jnp.matmul(x, wv_t, precision=hp) + bv
    s_ref = jnp.einsum("bqa,bka->bqk", q_ref, k_ref, precision=hp) / math.sqrt(A)
    p_ref = jax.nn.softmax(s_ref, axis=-1)
    o_ref = jnp.einsum("bqk,bka->bqa", p_ref, v_ref, precision=hp)

    # Exact softmax + HIGHEST-precision matmuls -> tight f32 tolerance again
    # (restored from the relaxed 1e-4 needed by the old approx reciprocal).
    assert jnp.allclose(out, o_ref, atol=2e-5, rtol=1e-5), \
        float(jnp.max(jnp.abs(out - o_ref)))
    assert jnp.allclose(probs, p_ref, atol=2e-5, rtol=1e-5), \
        float(jnp.max(jnp.abs(probs - p_ref)))
    print("KERNEL_OK")
</pallas_src>

<mosaic_0001>
module attributes {stable_mosaic.version = 11 : i64} {
  func.func @_sdpa_kernel(%arg0: memref<16x49xf32, #tpu.memory_space<vmem>>, %arg1: memref<49x48xf32, #tpu.memory_space<vmem>>, %arg2: memref<2x8x16xf32, #tpu.memory_space<vmem>>, %arg3: memref<2x8x8xf32, #tpu.memory_space<vmem>>) attributes {dimension_semantics = [], scalar_prefetch = 0 : i64, scratch_operands = 0 : i64, tpu.core_type = #tpu.core_type<tc>} {
    %c0 = arith.constant 0 : index
    %c0_0 = arith.constant 0 : index
    %0 = vector.load %arg0[%c0, %c0_0] : memref<16x49xf32, #tpu.memory_space<vmem>>, vector<16x49xf32>
    %c0_1 = arith.constant 0 : index
    %c0_2 = arith.constant 0 : index
    %1 = vector.load %arg1[%c0_1, %c0_2] : memref<49x48xf32, #tpu.memory_space<vmem>>, vector<49x48xf32>
    %cst = arith.constant dense<0.000000e+00> : vector<16x48xf32>
    %2 = tpu.matmul %0, %1, %cst {dimension_numbers = #tpu.dot_dimension_numbers<[1], [0], [0], [1], [0, 0, 1, 1], [], []>, precision = #tpu.contract_precision<fp32>} : vector<16x49xf32>, vector<49x48xf32>, vector<16x48xf32> -> vector<16x48xf32>
    %3 = vector.extract_strided_slice %2 {offsets = [0, 0], sizes = [8, 48], strides = [1, 1]} : vector<16x48xf32> to vector<8x48xf32>
    %4 = vector.extract_strided_slice %3 {offsets = [0, 0], sizes = [8, 16], strides = [1, 1]} : vector<8x48xf32> to vector<8x16xf32>
    %5 = vector.extract_strided_slice %3 {offsets = [0, 16], sizes = [8, 16], strides = [1, 1]} : vector<8x48xf32> to vector<8x16xf32>
    %6 = vector.extract_strided_slice %3 {offsets = [0, 32], sizes = [8, 16], strides = [1, 1]} : vector<8x48xf32> to vector<8x16xf32>
    %cst_3 = arith.constant dense<0.000000e+00> : vector<8x8xf32>
    %7 = tpu.matmul %4, %5, %cst_3 {dimension_numbers = #tpu.dot_dimension_numbers<[1], [1], [0], [0], [0, 0, 1, 0], [], []>, precision = #tpu.contract_precision<fp32>} : vector<8x16xf32>, vector<8x16xf32>, vector<8x8xf32> -> vector<8x8xf32>
    %cst_4 = arith.constant dense<0xFF800000> : vector<8xf32>
    %8 = vector.multi_reduction <maximumf>, %7, %cst_4 [1] : vector<8x8xf32> to vector<8xf32>
    %9 = vector.shape_cast %8 : vector<8xf32> to vector<8x1xf32>
    %10 = vector.broadcast %9 : vector<8x1xf32> to vector<8x8xf32>
    %11 = arith.subf %7, %10 : vector<8x8xf32>
    %12 = math.exp %11 : vector<8x8xf32>
    %cst_5 = arith.constant dense<0.000000e+00> : vector<8xf32>
    %13 = vector.multi_reduction <add>, %12, %cst_5 [1] : vector<8x8xf32> to vector<8xf32>
    %14 = vector.shape_cast %13 : vector<8xf32> to vector<8x1xf32>
    %15 = vector.broadcast %14 : vector<8x1xf32> to vector<8x8xf32>
    %16 = arith.divf %12, %15 : vector<8x8xf32>
    %cst_6 = arith.constant dense<0.000000e+00> : vector<8x16xf32>
    %17 = tpu.matmul %16, %6, %cst_6 {dimension_numbers = #tpu.dot_dimension_numbers<[1], [0], [0], [1], [0, 0, 1, 1], [], []>, precision = #tpu.contract_precision<fp32>} : vector<8x8xf32>, vector<8x16xf32>, vector<8x16xf32> -> vector<8x16xf32>
    %c0_7 = arith.constant 0 : index
    %c0_8 = arith.constant 0 : index
    %c0_9 = arith.constant 0 : index
    %18 = vector.load %arg2[%c0_7, %c0_8, %c0_9] : memref<2x8x16xf32, #tpu.memory_space<vmem>>, vector<1x8x16xf32>
    %19 = vector.shape_cast %18 : vector<1x8x16xf32> to vector<8x16xf32>
    %20 = vector.shape_cast %17 : vector<8x16xf32> to vector<1x8x16xf32>
    tpu.vector_store %arg2[%c0_7, %c0_8, %c0_9], %20 {strides = array<i32>} : memref<2x8x16xf32, #tpu.memory_space<vmem>>, vector<1x8x16xf32>,
    %c0_10 = arith.constant 0 : index
    %c0_11 = arith.constant 0 : index
    %c0_12 = arith.constant 0 : index
    %21 = vector.load %arg3[%c0_10, %c0_11, %c0_12] : memref<2x8x8xf32, #tpu.memory_space<vmem>>, vector<1x8x8xf32>
    %22 = vector.shape_cast %21 : vector<1x8x8xf32> to vector<8x8xf32>
    %23 = vector.shape_cast %16 : vector<8x8xf32> to vector<1x8x8xf32>
    tpu.vector_store %arg3[%c0_10, %c0_11, %c0_12], %23 {strides = array<i32>} : memref<2x8x8xf32, #tpu.memory_space<vmem>>, vector<1x8x8xf32>,
    %24 = vector.extract_strided_slice %2 {offsets = [8, 0], sizes = [8, 48], strides = [1, 1]} : vector<16x48xf32> to vector<8x48xf32>
    %25 = vector.extract_strided_slice %24 {offsets = [0, 0], sizes = [8, 16], strides = [1, 1]} : vector<8x48xf32> to vector<8x16xf32>
    %26 = vector.extract_strided_slice %24 {offsets = [0, 16], sizes = [8, 16], strides = [1, 1]} : vector<8x48xf32> to vector<8x16xf32>
    %27 = vector.extract_strided_slice %24 {offsets = [0, 32], sizes = [8, 16], strides = [1, 1]} : vector<8x48xf32> to vector<8x16xf32>
    %cst_13 = arith.constant dense<0.000000e+00> : vector<8x8xf32>
    %28 = tpu.matmul %25, %26, %cst_13 {dimension_numbers = #tpu.dot_dimension_numbers<[1], [1], [0], [0], [0, 0, 1, 0], [], []>, precision = #tpu.contract_precision<fp32>} : vector<8x16xf32>, vector<8x16xf32>, vector<8x8xf32> -> vector<8x8xf32>
    %cst_14 = arith.constant dense<0xFF800000> : vector<8xf32>
    %29 = vector.multi_reduction <maximumf>, %28, %cst_14 [1] : vector<8x8xf32> to vector<8xf32>
    %30 = vector.shape_cast %29 : vector<8xf32> to vector<8x1xf32>
    %31 = vector.broadcast %30 : vector<8x1xf32> to vector<8x8xf32>
    %32 = arith.subf %28, %31 : vector<8x8xf32>
    %33 = math.exp %32 : vector<8x8xf32>
    %cst_15 = arith.constant dense<0.000000e+00> : vector<8xf32>
    %34 = vector.multi_reduction <add>, %33, %cst_15 [1] : vector<8x8xf32> to vector<8xf32>
    %35 = vector.shape_cast %34 : vector<8xf32> to vector<8x1xf32>
    %36 = vector.broadcast %35 : vector<8x1xf32> to vector<8x8xf32>
    %37 = arith.divf %33, %36 : vector<8x8xf32>
    %cst_16 = arith.constant dense<0.000000e+00> : vector<8x16xf32>
    %38 = tpu.matmul %37, %27, %cst_16 {dimension_numbers = #tpu.dot_dimension_numbers<[1], [0], [0], [1], [0, 0, 1, 1], [], []>, precision = #tpu.contract_precision<fp32>} : vector<8x8xf32>, vector<8x16xf32>, vector<8x16xf32> -> vector<8x16xf32>
    %c1 = arith.constant 1 : index
    %c0_17 = arith.constant 0 : index
    %c0_18 = arith.constant 0 : index
    %39 = vector.load %arg2[%c1, %c0_17, %c0_18] : memref<2x8x16xf32, #tpu.memory_space<vmem>>, vector<1x8x16xf32>
    %40 = vector.shape_cast %39 : vector<1x8x16xf32> to vector<8x16xf32>
    %41 = vector.shape_cast %38 : vector<8x16xf32> to vector<1x8x16xf32>
    tpu.vector_store %arg2[%c1, %c0_17, %c0_18], %41 {strides = array<i32>} : memref<2x8x16xf32, #tpu.memory_space<vmem>>, vector<1x8x16xf32>,
    %c1_19 = arith.constant 1 : index
    %c0_20 = arith.constant 0 : index
    %c0_21 = arith.constant 0 : index
    %42 = vector.load %arg3[%c1_19, %c0_20, %c0_21] : memref<2x8x8xf32, #tpu.memory_space<vmem>>, vector<1x8x8xf32>
    %43 = vector.shape_cast %42 : vector<1x8x8xf32> to vector<8x8xf32>
    %44 = vector.shape_cast %37 : vector<8x8xf32> to vector<1x8x8xf32>
    tpu.vector_store %arg3[%c1_19, %c0_20, %c0_21], %44 {strides = array<i32>} : memref<2x8x8xf32, #tpu.memory_space<vmem>>, vector<1x8x8xf32>,
    return
  }
}

</mosaic_0001>

<llo_original>
// kernel: scaled_dot_product_attention.1
$region0: #{scaled_dot_product_attention.1}
  #allocation0 [shape = 'u32[]', space=smem, size = 0x4, offset = 0x4, fixed_abs, tag = 'smem constant byte address 0x4 - core index']
  #allocation1 [shape = 'u32[144,128]{1,0:T(1,128)}', space=vmem, size = 0x12000, scoped, tag = 'internal scratch']
  %s0 = inlined_call_operand.vmem [shape: f32[16,49], index: 0, kind: input, shape index: {}]
  %s1 = inlined_call_operand.vmem [shape: f32[49,48], index: 1, kind: input, shape index: {}]
  %s2 = inlined_call_operand.hbm [shape: f32[2,8,16], index: 2, kind: output, shape index: {0}]
  %s3 = inlined_call_operand.hbm [shape: f32[2,8,8], index: 3, kind: output, shape index: {1}]
  %4 = xla_tuple %s2, %s3
  %s5 = sld [smem:[#allocation0]]
  $region26: #{scaled_dot_product_attention.1} parent=0
    _
  %s7 = ssub.s32 1, %s5
  %s8 = scalar_select 0, %s7, %s5
  $region1: #{scaled_dot_product_attention.1} parent=0
    #allocation2 [shape = 'u8[8192]{0}', space=vmem, size = 0x2000, scoped, tag = 'output window, operand 0, single buffered']
    #allocation3 [shape = 's32[1]{0}', space=sflag, size = 0x4, scoped, tag = 'scoped memory for scaled_dot_product_attention.1']
    #allocation4 [shape = 'u8[8192]{0}', space=vmem, size = 0x2000, scoped, tag = 'output window, operand 1, single buffered']
    #allocation5 [shape = 's32[1]{0}', space=sflag, size = 0x4, scoped, tag = 'scoped memory for scaled_dot_product_attention.1']
    %9 = vsyncpa [#allocation3], 0
    %10 = vsyncpa [#allocation5], 0
    // Predicated region
    $region2: #{scaled_dot_product_attention.1} parent=1 // pred_check
      _
    $region3: #{scaled_dot_product_attention.1} parent=1 // pred_check_branch
      %12 = sbr.rel (0) target = $region5
    $region4: #{scaled_dot_product_attention.1} parent=1 // pred_region
      _
    $region5: #{scaled_dot_product_attention.1} parent=1 // pred_fallthru
      _
    // Predicated region
    $region6: #{scaled_dot_product_attention.1} parent=1 // pred_check
      _
    $region7: #{scaled_dot_product_attention.1} parent=1 // pred_check_branch
      %14 = sbr.rel (0) target = $region9
    $region8: #{scaled_dot_product_attention.1} parent=1 // pred_region
      _
    $region9: #{scaled_dot_product_attention.1} parent=1 // pred_fallthru
      _
    %v15 = vld [vmem:[%s0] sm:$0xff]
    %v16 = vld [vmem:[%s0 + $0x8] sm:$0xff]
    %v17 = vld [vmem:[%s1] sm:$0xff]
    %v18 = vld [vmem:[%s1 + $0x8] sm:$0xff]
    %v19 = vld [vmem:[%s1 + $0x10] sm:$0xff]
    %v20 = vld [vmem:[%s1 + $0x18] sm:$0xff]
    %v21 = vld [vmem:[%s1 + $0x20] sm:$0xff]
    %v22 = vld [vmem:[%s1 + $0x28] sm:$0xff]
    %v23 = vld [vmem:[%s1 + $0x30] sm:$0x1]
    %vm24 = vcmask 400384
    %v26 = vsel %vm24, %v15, 0
    %v29 = vsel %vm24, %v16, 0
    %vm31 = vcmask 1040384
    %v33 = vsel %vm31, %v23, 0
    %35 = vmatprep.subr.mxu0 0.0
    %36 = vmatpush1.msra.mxu0 0.0
    %37 = vmatprep.subr.mxu0 0.0
    %38 = vmatpush1.msra.mxu0 0.0
    %39 = vmatprep.subr.mxu0 0.0
    %40 = vmatpush1.msra.mxu0 0.0
    %41 = vmatprep.subr.mxu0 0.0
    %42 = vmatpush1.msra.mxu0 0.0
    %43 = vmatprep.subr.mxu0 0.0
    %44 = vmatpush1.msra.mxu0 0.0
    %45 = vmatprep.subr.mxu0 0.0
    %46 = vmatpush1.msra.mxu0 0.0
    %47 = vmatprep.subr.mxu0 0.0
    %48 = vmatpush1.msra.mxu0 0.0
    %49 = vmatprep.subr.mxu0 0.0
    %50 = vmatpush1.msra.mxu0 0.0
    %51 = vmatprep.subr.mxu0 0.0
    %52 = vmatpush1.msra.mxu0 0.0
    %53 = vmatprep.subr.mxu0 0.0
    %v54 = vand.u32 %v33, 4294901760
    %55 = vmatpush1.msra.mxu0 %v54
    %56 = vmatprep.subr.mxu0 0.0
    %v57 = vand.u32 %v22, 4294901760
    %58 = vmatpush1.msra.mxu0 %v57
    %59 = vmatprep.subr.mxu0 0.0
    %v60 = vand.u32 %v21, 4294901760
    %61 = vmatpush1.msra.mxu0 %v60
    %62 = vmatprep.subr.mxu0 0.0
    %v63 = vand.u32 %v20, 4294901760
    %64 = vmatpush1.msra.mxu0 %v63
    %65 = vmatprep.subr.mxu0 0.0
    %v66 = vand.u32 %v19, 4294901760
    %67 = vmatpush1.msra.mxu0 %v66
    %68 = vmatprep.subr.mxu0 0.0
    %v69 = vand.u32 %v18, 4294901760
    %70 = vmatpush1.msra.mxu0 %v69
    %71 = vmatprep.subr.mxu0 0.0
    %v72 = vand.u32 %v17, 4294901760
    %73 = vmatpush1.msra.mxu0 %v72
    %74 = vmatprep.subr.mxu0 0.0
    %75 = vmatpush2.msra.mxu0 0.0
    %76 = vmatprep.subr.mxu0 0.0
    %77 = vmatpush2.msra.mxu0 0.0
    %78 = vmatprep.subr.mxu0 0.0
    %79 = vmatpush2.msra.mxu0 0.0
    %80 = vmatprep.subr.mxu0 0.0
    %81 = vmatpush2.msra.mxu0 0.0
    %82 = vmatprep.subr.mxu0 0.0
    %83 = vmatpush2.msra.mxu0 0.0
    %84 = vmatprep.subr.mxu0 0.0
    %85 = vmatpush2.msra.mxu0 0.0
    %86 = vmatprep.subr.mxu0 0.0
    %87 = vmatpush2.msra.mxu0 0.0
    %88 = vmatprep.subr.mxu0 0.0
    %89 = vmatpush2.msra.mxu0 0.0
    %90 = vmatprep.subr.mxu0 0.0
    %91 = vmatpush2.msra.mxu0 0.0
    %92 = vmatprep.subr.mxu0 0.0
    %93 = vmatpush2.msra.mxu0 0.0
    %94 = vmatprep.subr.mxu0 0.0
    %95 = vmatpush2.msra.mxu0 0.0
    %96 = vmatprep.subr.mxu0 0.0
    %97 = vmatpush2.msra.mxu0 0.0
    %98 = vmatprep.subr.mxu0 0.0
    %99 = vmatpush2.msra.mxu0 0.0
    %100 = vmatprep.subr.mxu0 0.0
    %101 = vmatpush2.msra.mxu0 0.0
    %102 = vmatprep.subr.mxu0 0.0
    %103 = vmatpush2.msra.mxu0 0.0
    %104 = vmatprep.subr.mxu0 0.0
    %105 = vmatpush2.msra.mxu0 0.0
    %106 = vmatprep.mubr.f32.mxu0 0.0
    %v107 = vand.u32 %v26, 4294901760
    %v108 = vsub.f32 %v26, %v107
    %v109 = vand.u32 %v108, 4294901760
    %v110 = vsub.f32 %v108, %v109
    %v111 = vand.u32 %v110, 4294901760
    %112 = vmatmul.mubr.f32.gmra.mxu0 %v111
    %v113 = vpop.f32.mrf.mxu0
    %v114 = vadd.f32 0.0, %v113
    %v115 = vpop.f32.mrf.mxu0
    %116 = vmatprep.mubr.f32.mxu0 0.0
    %v117 = vand.u32 %v29, 4294901760
    %v118 = vsub.f32 %v29, %v117
    %v119 = vand.u32 %v118, 4294901760
    %v120 = vsub.f32 %v118, %v119
    %v121 = vand.u32 %v120, 4294901760
    %122 = vmatmul.mubr.f32.gmra.mxu0 %v121
    %v123 = vpop.f32.mrf.mxu0
    %v124 = vadd.f32 0.0, %v123
    %v125 = vpop.f32.mrf.mxu0
    %126 = vdwg.mxu0
    %127 = vmatprep.subr.mxu0 0.0
    %128 = vmatpush1.msra.mxu0 0.0
    %129 = vmatprep.subr.mxu0 0.0
    %130 = vmatpush1.msra.mxu0 0.0
    %131 = vmatprep.subr.mxu0 0.0
    %132 = vmatpush1.msra.mxu0 0.0
    %133 = vmatprep.subr.mxu0 0.0
    %134 = vmatpush1.msra.mxu0 0.0
    %135 = vmatprep.subr.mxu0 0.0
    %136 = vmatpush1.msra.mxu0 0.0
    %137 = vmatprep.subr.mxu0 0.0
    %138 = vmatpush1.msra.mxu0 0.0
    %139 = vmatprep.subr.mxu0 0.0
    %140 = vmatpush1.msra.mxu0 0.0
    %141 = vmatprep.subr.mxu0 0.0
    %142 = vmatpush1.msra.mxu0 0.0
    %143 = vmatprep.subr.mxu0 0.0
    %144 = vmatpush1.msra.mxu0 0.0
    %145 = vmatprep.subr.mxu0 0.0
    %v146 = vand.u32 %v33, 4294901760
    %v147 = vsub.f32 %v33, %v146
    %v148 = vand.u32 %v147, 4294901760
    %v149 = vsub.f32 %v147, %v148
    %v150 = vand.u32 %v149, 4294901760
    %151 = vmatpush1.msra.mxu0 %v150
    %152 = vmatprep.subr.mxu0 0.0
    %v153 = vand.u32 %v22, 4294901760
    %v154 = vsub.f32 %v22, %v153
    %v155 = vand.u32 %v154, 4294901760
    %v156 = vsub.f32 %v154, %v155
    %v157 = vand.u32 %v156, 4294901760
    %158 = vmatpush1.msra.mxu0 %v157
    %159 = vmatprep.subr.mxu0 0.0
    %v160 = vand.u32 %v21, 4294901760
    %v161 = vsub.f32 %v21, %v160
    %v162 = vand.u32 %v161, 4294901760
    %v163 = vsub.f32 %v161, %v162
    %v164 = vand.u32 %v163, 4294901760
    %165 = vmatpush1.msra.mxu0 %v164
    %166 = vmatprep.subr.mxu0 0.0
    %v167 = vand.u32 %v20, 4294901760
    %v168 = vsub.f32 %v20, %v167
    %v169 = vand.u32 %v168, 4294901760
    %v170 = vsub.f32 %v168, %v169
    %v171 = vand.u32 %v170, 4294901760
    %172 = vmatpush1.msra.mxu0 %v171
    %173 = vmatprep.subr.mxu0 0.0
    %v174 = vand.u32 %v19, 4294901760
    %v175 = vsub.f32 %v19, %v174
    %v176 = vand.u32 %v175, 4294901760
    %v177 = vsub.f32 %v175, %v176
    %v178 = vand.u32 %v177, 4294901760
    %179 = vmatpush1.msra.mxu0 %v178
    %180 = vmatprep.subr.mxu0 0.0
    %v181 = vand.u32 %v18, 4294901760
    %v182 = vsub.f32 %v18, %v181
    %v183 = vand.u32 %v182, 4294901760
    %v184 = vsub.f32 %v182, %v183
    %v185 = vand.u32 %v184, 4294901760
    %186 = vmatpush1.msra.mxu0 %v185
    %187 = vmatprep.subr.mxu0 0.0
    %v188 = vand.u32 %v17, 4294901760
    %v189 = vsub.f32 %v17, %v188
    %v190 = vand.u32 %v189, 4294901760
    %v191 = vsub.f32 %v189, %v190
    %v192 = vand.u32 %v191, 4294901760
    %193 = vmatpush1.msra.mxu0 %v192
    %194 = vmatprep.subr.mxu0 0.0
    %195 = vmatpush2.msra.mxu0 0.0
    %196 = vmatprep.subr.mxu0 0.0
    %197 = vmatpush2.msra.mxu0 0.0
    %198 = vmatprep.subr.mxu0 0.0
    %199 = vmatpush2.msra.mxu0 0.0
    %200 = vmatprep.subr.mxu0 0.0
    %201 = vmatpush2.msra.mxu0 0.0
    %202 = vmatprep.subr.mxu0 0.0
    %203 = vmatpush2.msra.mxu0 0.0
    %204 = vmatprep.subr.mxu0 0.0
    %205 = vmatpush2.msra.mxu0 0.0
    %206 = vmatprep.subr.mxu0 0.0
    %207 = vmatpush2.msra.mxu0 0.0
    %208 = vmatprep.subr.mxu0 0.0
    %209 = vmatpush2.msra.mxu0 0.0
    %210 = vmatprep.subr.mxu0 0.0
    %211 = vmatpush2.msra.mxu0 0.0
    %212 = vmatprep.subr.mxu0 0.0
    %213 = vmatpush2.msra.mxu0 0.0
    %214 = vmatprep.subr.mxu0 0.0
    %215 = vmatpush2.msra.mxu0 0.0
    %216 = vmatprep.subr.mxu0 0.0
    %217 = vmatpush2.msra.mxu0 0.0
    %218 = vmatprep.subr.mxu0 0.0
    %219 = vmatpush2.msra.mxu0 0.0
    %220 = vmatprep.subr.mxu0 0.0
    %221 = vmatpush2.msra.mxu0 0.0
    %222 = vmatprep.subr.mxu0 0.0
    %223 = vmatpush2.msra.mxu0 0.0
    %224 = vmatprep.subr.mxu0 0.0
    %225 = vmatpush2.msra.mxu0 0.0
    %226 = vmatprep.mubr.f32.mxu0 0.0
    %v227 = vand.u32 %v26, 4294901760
    %228 = vmatmul.mubr.f32.gmra.mxu0 %v227
    %v229 = vpop.f32.mrf.mxu0
    %v230 = vadd.f32 %v114, %v229
    %v231 = vpop.f32.mrf.mxu0
    %232 = vmatprep.mubr.f32.mxu0 0.0
    %v233 = vand.u32 %v29, 4294901760
    %234 = vmatmul.mubr.f32.gmra.mxu0 %v233
    %v235 = vpop.f32.mrf.mxu0
    %v236 = vadd.f32 %v124, %v235
    %v237 = vpop.f32.mrf.mxu0
    %238 = vdwg.mxu0
    %239 = vmatprep.subr.mxu0 0.0
    %240 = vmatpush1.msra.mxu0 0.0
    %241 = vmatprep.subr.mxu0 0.0
    %242 = vmatpush1.msra.mxu0 0.0
    %243 = vmatprep.subr.mxu0 0.0
    %244 = vmatpush1.msra.mxu0 0.0
    %245 = vmatprep.subr.mxu0 0.0
    %246 = vmatpush1.msra.mxu0 0.0
    %247 = vmatprep.subr.mxu0 0.0
    %248 = vmatpush1.msra.mxu0 0.0
    %249 = vmatprep.subr.mxu0 0.0
    %250 = vmatpush1.msra.mxu0 0.0
    %251 = vmatprep.subr.mxu0 0.0
    %252 = vmatpush1.msra.mxu0 0.0
    %253 = vmatprep.subr.mxu0 0.0
    %254 = vmatpush1.msra.mxu0 0.0
    %255 = vmatprep.subr.mxu0 0.0
    %256 = vmatpush1.msra.mxu0 0.0
    %257 = vmatprep.subr.mxu0 0.0
    %v258 = vand.u32 %v33, 4294901760
    %v259 = vsub.f32 %v33, %v258
    %260 = vmatpush1.msra.mxu0 %v259
    %261 = vmatprep.subr.mxu0 0.0
    %v262 = vand.u32 %v22, 4294901760
    %v263 = vsub.f32 %v22, %v262
    %264 = vmatpush1.msra.mxu0 %v263
    %265 = vmatprep.subr.mxu0 0.0
    %v266 = vand.u32 %v21, 4294901760
    %v267 = vsub.f32 %v21, %v266
    %268 = vmatpush1.msra.mxu0 %v267
    %269 = vmatprep.subr.mxu0 0.0
    %v270 = vand.u32 %v20, 4294901760
    %v271 = vsub.f32 %v20, %v270
    %272 = vmatpush1.msra.mxu0 %v271
    %273 = vmatprep.subr.mxu0 0.0
    %v274 = vand.u32 %v19, 4294901760
    %v275 = vsub.f32 %v19, %v274
    %276 = vmatpush1.msra.mxu0 %v275
    %277 = vmatprep.subr.mxu0 0.0
    %v278 = vand.u32 %v18, 4294901760
    %v279 = vsub.f32 %v18, %v278
    %280 = vmatpush1.msra.mxu0 %v279
    %281 = vmatprep.subr.mxu0 0.0
    %v282 = vand.u32 %v17, 4294901760
    %v283 = vsub.f32 %v17, %v282
    %284 = vmatpush1.msra.mxu0 %v283
    %285 = vmatprep.subr.mxu0 0.0
    %286 = vmatpush2.msra.mxu0 0.0
    %287 = vmatprep.subr.mxu0 0.0
    %288 = vmatpush2.msra.mxu0 0.0
    %289 = vmatprep.subr.mxu0 0.0
    %290 = vmatpush2.msra.mxu0 0.0
    %291 = vmatprep.subr.mxu0 0.0
    %292 = vmatpush2.msra.mxu0 0.0
    %293 = vmatprep.subr.mxu0 0.0
    %294 = vmatpush2.msra.mxu0 0.0
    %295 = vmatprep.subr.mxu0 0.0
    %296 = vmatpush2.msra.mxu0 0.0
    %297 = vmatprep.subr.mxu0 0.0
    %298 = vmatpush2.msra.mxu0 0.0
    %299 = vmatprep.subr.mxu0 0.0
    %300 = vmatpush2.msra.mxu0 0.0
    %301 = vmatprep.subr.mxu0 0.0
    %302 = vmatpush2.msra.mxu0 0.0
    %303 = vmatprep.subr.mxu0 0.0
    %304 = vmatpush2.msra.mxu0 0.0
    %305 = vmatprep.subr.mxu0 0.0
    %306 = vmatpush2.msra.mxu0 0.0
    %307 = vmatprep.subr.mxu0 0.0
    %308 = vmatpush2.msra.mxu0 0.0
    %309 = vmatprep.subr.mxu0 0.0
    %310 = vmatpush2.msra.mxu0 0.0
    %311 = vmatprep.subr.mxu0 0.0
    %312 = vmatpush2.msra.mxu0 0.0
    %313 = vmatprep.subr.mxu0 0.0
    %314 = vmatpush2.msra.mxu0 0.0
    %315 = vmatprep.subr.mxu0 0.0
    %316 = vmatpush2.msra.mxu0 0.0
    %317 = vmatprep.mubr.f32.mxu0 0.0
    %v318 = vand.u32 %v26, 4294901760
    %v319 = vsub.f32 %v26, %v318
    %320 = vmatmul.mubr.f32.gmra.mxu0 %v319
    %v321 = vpop.f32.mrf.mxu0
    %v322 = vadd.f32 %v230, %v321
    %v323 = vpop.f32.mrf.mxu0
    %324 = vmatprep.mubr.f32.mxu0 0.0
    %v325 = vand.u32 %v29, 4294901760
    %v326 = vsub.f32 %v29, %v325
    %327 = vmatmul.mubr.f32.gmra.mxu0 %v326
    %v328 = vpop.f32.mrf.mxu0
    %v329 = vadd.f32 %v236, %v328
    %v330 = vpop.f32.mrf.mxu0
    %331 = vdwg.mxu0
    %332 = vmatprep.subr.mxu0 0.0
    %333 = vmatpush1.msra.mxu0 0.0
    %334 = vmatprep.subr.mxu0 0.0
    %335 = vmatpush1.msra.mxu0 0.0
    %336 = vmatprep.subr.mxu0 0.0
    %337 = vmatpush1.msra.mxu0 0.0
    %338 = vmatprep.subr.mxu0 0.0
    %339 = vmatpush1.msra.mxu0 0.0
    %340 = vmatprep.subr.mxu0 0.0
    %341 = vmatpush1.msra.mxu0 0.0
    %342 = vmatprep.subr.mxu0 0.0
    %343 = vmatpush1.msra.mxu0 0.0
    %344 = vmatprep.subr.mxu0 0.0
    %345 = vmatpush1.msra.mxu0 0.0
    %346 = vmatprep.subr.mxu0 0.0
    %347 = vmatpush1.msra.mxu0 0.0
    %348 = vmatprep.subr.mxu0 0.0
    %349 = vmatpush1.msra.mxu0 0.0
    %350 = vmatprep.subr.mxu0 0.0
    %v351 = vand.u32 %v33, 4294901760
    %352 = vmatpush1.msra.mxu0 %v351
    %353 = vmatprep.subr.mxu0 0.0
    %v354 = vand.u32 %v22, 4294901760
    %355 = vmatpush1.msra.mxu0 %v354
    %356 = vmatprep.subr.mxu0 0.0
    %v357 = vand.u32 %v21, 4294901760
    %358 = vmatpush1.msra.mxu0 %v357
    %359 = vmatprep.subr.mxu0 0.0
    %v360 = vand.u32 %v20, 4294901760
    %361 = vmatpush1.msra.mxu0 %v360
    %362 = vmatprep.subr.mxu0 0.0
    %v363 = vand.u32 %v19, 4294901760
    %364 = vmatpush1.msra.mxu0 %v363
    %365 = vmatprep.subr.mxu0 0.0
    %v366 = vand.u32 %v18, 4294901760
    %367 = vmatpush1.msra.mxu0 %v366
    %368 = vmatprep.subr.mxu0 0.0
    %v369 = vand.u32 %v17, 4294901760
    %370 = vmatpush1.msra.mxu0 %v369
    %371 = vmatprep.subr.mxu0 0.0
    %372 = vmatpush2.msra.mxu0 0.0
    %373 = vmatprep.subr.mxu0 0.0
    %374 = vmatpush2.msra.mxu0 0.0
    %375 = vmatprep.subr.mxu0 0.0
    %376 = vmatpush2.msra.mxu0 0.0
    %377 = vmatprep.subr.mxu0 0.0
    %378 = vmatpush2.msra.mxu0 0.0
    %379 = vmatprep.subr.mxu0 0.0
    %380 = vmatpush2.msra.mxu0 0.0
    %381 = vmatprep.subr.mxu0 0.0
    %382 = vmatpush2.msra.mxu0 0.0
    %383 = vmatprep.subr.mxu0 0.0
    %384 = vmatpush2.msra.mxu0 0.0
    %385 = vmatprep.subr.mxu0 0.0
    %386 = vmatpush2.msra.mxu0 0.0
    %387 = vmatprep.subr.mxu0 0.0
    %388 = vmatpush2.msra.mxu0 0.0
    %389 = vmatprep.subr.mxu0 0.0
    %390 = vmatpush2.msra.mxu0 0.0
    %391 = vmatprep.subr.mxu0 0.0
    %392 = vmatpush2.msra.mxu0 0.0
    %393 = vmatprep.subr.mxu0 0.0
    %394 = vmatpush2.msra.mxu0 0.0
    %395 = vmatprep.subr.mxu0 0.0
    %396 = vmatpush2.msra.mxu0 0.0
    %397 = vmatprep.subr.mxu0 0.0
    %398 = vmatpush2.msra.mxu0 0.0
    %399 = vmatprep.subr.mxu0 0.0
    %400 = vmatpush2.msra.mxu0 0.0
    %401 = vmatprep.subr.mxu0 0.0
    %402 = vmatpush2.msra.mxu0 0.0
    %403 = vmatprep.mubr.f32.mxu0 0.0
    %v404 = vand.u32 %v26, 4294901760
    %v405 = vsub.f32 %v26, %v404
    %v406 = vand.u32 %v405, 4294901760
    %407 = vmatmul.mubr.f32.gmra.mxu0 %v406
    %v408 = vpop.f32.mrf.mxu0
    %v409 = vadd.f32 %v322, %v408
    %v410 = vpop.f32.mrf.mxu0
    %411 = vmatprep.mubr.f32.mxu0 0.0
    %v412 = vand.u32 %v29, 4294901760
    %v413 = vsub.f32 %v29, %v412
    %v414 = vand.u32 %v413, 4294901760
    %415 = vmatmul.mubr.f32.gmra.mxu0 %v414
    %v416 = vpop.f32.mrf.mxu0
    %v417 = vadd.f32 %v329, %v416
    %v418 = vpop.f32.mrf.mxu0
    %419 = vdwg.mxu0
    %420 = vmatprep.subr.mxu0 0.0
    %421 = vmatpush1.msra.mxu0 0.0
    %422 = vmatprep.subr.mxu0 0.0
    %423 = vmatpush1.msra.mxu0 0.0
    %424 = vmatprep.subr.mxu0 0.0
    %425 = vmatpush1.msra.mxu0 0.0
    %426 = vmatprep.subr.mxu0 0.0
    %427 = vmatpush1.msra.mxu0 0.0
    %428 = vmatprep.subr.mxu0 0.0
    %429 = vmatpush1.msra.mxu0 0.0
    %430 = vmatprep.subr.mxu0 0.0
    %431 = vmatpush1.msra.mxu0 0.0
    %432 = vmatprep.subr.mxu0 0.0
    %433 = vmatpush1.msra.mxu0 0.0
    %434 = vmatprep.subr.mxu0 0.0
    %435 = vmatpush1.msra.mxu0 0.0
    %436 = vmatprep.subr.mxu0 0.0
    %437 = vmatpush1.msra.mxu0 0.0
    %438 = vmatprep.subr.mxu0 0.0
    %v439 = vand.u32 %v33, 4294901760
    %v440 = vsub.f32 %v33, %v439
    %v441 = vand.u32 %v440, 4294901760
    %442 = vmatpush1.msra.mxu0 %v441
    %443 = vmatprep.subr.mxu0 0.0
    %v444 = vand.u32 %v22, 4294901760
    %v445 = vsub.f32 %v22, %v444
    %v446 = vand.u32 %v445, 4294901760
    %447 = vmatpush1.msra.mxu0 %v446
    %448 = vmatprep.subr.mxu0 0.0
    %v449 = vand.u32 %v21, 4294901760
    %v450 = vsub.f32 %v21, %v449
    %v451 = vand.u32 %v450, 4294901760
    %452 = vmatpush1.msra.mxu0 %v451
    %453 = vmatprep.subr.mxu0 0.0
    %v454 = vand.u32 %v20, 4294901760
    %v455 = vsub.f32 %v20, %v454
    %v456 = vand.u32 %v455, 4294901760
    %457 = vmatpush1.msra.mxu0 %v456
    %458 = vmatprep.subr.mxu0 0.0
    %v459 = vand.u32 %v19, 4294901760
    %v460 = vsub.f32 %v19, %v459
    %v461 = vand.u32 %v460, 4294901760
    %462 = vmatpush1.msra.mxu0 %v461
    %463 = vmatprep.subr.mxu0 0.0
    %v464 = vand.u32 %v18, 4294901760
    %v465 = vsub.f32 %v18, %v464
    %v466 = vand.u32 %v465, 4294901760
    %467 = vmatpush1.msra.mxu0 %v466
    %468 = vmatprep.subr.mxu0 0.0
    %v469 = vand.u32 %v17, 4294901760
    %v470 = vsub.f32 %v17, %v469
    %v471 = vand.u32 %v470, 4294901760
    %472 = vmatpush1.msra.mxu0 %v471
    %473 = vmatprep.subr.mxu0 0.0
    %474 = vmatpush2.msra.mxu0 0.0
    %475 = vmatprep.subr.mxu0 0.0
    %476 = vmatpush2.msra.mxu0 0.0
    %477 = vmatprep.subr.mxu0 0.0
    %478 = vmatpush2.msra.mxu0 0.0
    %479 = vmatprep.subr.mxu0 0.0
    %480 = vmatpush2.msra.mxu0 0.0
    %481 = vmatprep.subr.mxu0 0.0
    %482 = vmatpush2.msra.mxu0 0.0
    %483 = vmatprep.subr.mxu0 0.0
    %484 = vmatpush2.msra.mxu0 0.0
    %485 = vmatprep.subr.mxu0 0.0
    %486 = vmatpush2.msra.mxu0 0.0
    %487 = vmatprep.subr.mxu0 0.0
    %488 = vmatpush2.msra.mxu0 0.0
    %489 = vmatprep.subr.mxu0 0.0
    %490 = vmatpush2.msra.mxu0 0.0
    %491 = vmatprep.subr.mxu0 0.0
    %492 = vmatpush2.msra.mxu0 0.0
    %493 = vmatprep.subr.mxu0 0.0
    %494 = vmatpush2.msra.mxu0 0.0
    %495 = vmatprep.subr.mxu0 0.0
    %496 = vmatpush2.msra.mxu0 0.0
    %497 = vmatprep.subr.mxu0 0.0
    %498 = vmatpush2.msra.mxu0 0.0
    %499 = vmatprep.subr.mxu0 0.0
    %500 = vmatpush2.msra.mxu0 0.0
    %501 = vmatprep.subr.mxu0 0.0
    %502 = vmatpush2.msra.mxu0 0.0
    %503 = vmatprep.subr.mxu0 0.0
    %504 = vmatpush2.msra.mxu0 0.0
    %505 = vmatprep.mubr.f32.mxu0 0.0
    %v506 = vand.u32 %v26, 4294901760
    %507 = vmatmul.mubr.f32.gmra.mxu0 %v506
    %v508 = vpop.f32.mrf.mxu0
    %v509 = vadd.f32 %v409, %v508
    %v510 = vpop.f32.mrf.mxu0
    %511 = vmatprep.mubr.f32.mxu0 0.0
    %v512 = vand.u32 %v29, 4294901760
    %513 = vmatmul.mubr.f32.gmra.mxu0 %v512
    %v514 = vpop.f32.mrf.mxu0
    %v515 = vadd.f32 %v417, %v514
    %v516 = vpop.f32.mrf.mxu0
    %517 = vdwg.mxu0
    %518 = vmatprep.subr.mxu0 0.0
    %519 = vmatpush1.msra.mxu0 0.0
    %520 = vmatprep.subr.mxu0 0.0
    %521 = vmatpush1.msra.mxu0 0.0
    %522 = vmatprep.subr.mxu0 0.0
    %523 = vmatpush1.msra.mxu0 0.0
    %524 = vmatprep.subr.mxu0 0.0
    %525 = vmatpush1.msra.mxu0 0.0
    %526 = vmatprep.subr.mxu0 0.0
    %527 = vmatpush1.msra.mxu0 0.0
    %528 = vmatprep.subr.mxu0 0.0
    %529 = vmatpush1.msra.mxu0 0.0
    %530 = vmatprep.subr.mxu0 0.0
    %531 = vmatpush1.msra.mxu0 0.0
    %532 = vmatprep.subr.mxu0 0.0
    %533 = vmatpush1.msra.mxu0 0.0
    %534 = vmatprep.subr.mxu0 0.0
    %535 = vmatpush1.msra.mxu0 0.0
    %536 = vmatprep.subr.mxu0 0.0
    %v537 = vand.u32 %v33, 4294901760
    %538 = vmatpush1.msra.mxu0 %v537
    %539 = vmatprep.subr.mxu0 0.0
    %v540 = vand.u32 %v22, 4294901760
    %541 = vmatpush1.msra.mxu0 %v540
    %542 = vmatprep.subr.mxu0 0.0
    %v543 = vand.u32 %v21, 4294901760
    %544 = vmatpush1.msra.mxu0 %v543
    %545 = vmatprep.subr.mxu0 0.0
    %v546 = vand.u32 %v20, 4294901760
    %547 = vmatpush1.msra.mxu0 %v546
    %548 = vmatprep.subr.mxu0 0.0
    %v549 = vand.u32 %v19, 4294901760
    %550 = vmatpush1.msra.mxu0 %v549
    %551 = vmatprep.subr.mxu0 0.0
    %v552 = vand.u32 %v18, 4294901760
    %553 = vmatpush1.msra.mxu0 %v552
    %554 = vmatprep.subr.mxu0 0.0
    %v555 = vand.u32 %v17, 4294901760
    %556 = vmatpush1.msra.mxu0 %v555
    %557 = vmatprep.subr.mxu0 0.0
    %558 = vmatpush2.msra.mxu0 0.0
    %559 = vmatprep.subr.mxu0 0.0
    %560 = vmatpush2.msra.mxu0 0.0
    %561 = vmatprep.subr.mxu0 0.0
    %562 = vmatpush2.msra.mxu0 0.0
    %563 = vmatprep.subr.mxu0 0.0
    %564 = vmatpush2.msra.mxu0 0.0
    %565 = vmatprep.subr.mxu0 0.0
    %566 = vmatpush2.msra.mxu0 0.0
    %567 = vmatprep.subr.mxu0 0.0
    %568 = vmatpush2.msra.mxu0 0.0
    %569 = vmatprep.subr.mxu0 0.0
    %570 = vmatpush2.msra.mxu0 0.0
    %571 = vmatprep.subr.mxu0 0.0
    %572 = vmatpush2.msra.mxu0 0.0
    %573 = vmatprep.subr.mxu0 0.0
    %574 = vmatpush2.msra.mxu0 0.0
    %575 = vmatprep.subr.mxu0 0.0
    %576 = vmatpush2.msra.mxu0 0.0
    %577 = vmatprep.subr.mxu0 0.0
    %578 = vmatpush2.msra.mxu0 0.0
    %579 = vmatprep.subr.mxu0 0.0
    %580 = vmatpush2.msra.mxu0 0.0
    %581 = vmatprep.subr.mxu0 0.0
    %582 = vmatpush2.msra.mxu0 0.0
    %583 = vmatprep.subr.mxu0 0.0
    %584 = vmatpush2.msra.mxu0 0.0
    %585 = vmatprep.subr.mxu0 0.0
    %586 = vmatpush2.msra.mxu0 0.0
    %587 = vmatprep.subr.mxu0 0.0
    %588 = vmatpush2.msra.mxu0 0.0
    %589 = vmatprep.mubr.f32.mxu0 0.0
    %v590 = vand.u32 %v26, 4294901760
    %591 = vmatmul.mubr.f32.gmra.mxu0 %v590
    %v592 = vpop.f32.mrf.mxu0
    %v593 = vadd.f32 %v509, %v592
    %v594 = vpop.f32.mrf.mxu0
    %595 = vmatprep.mubr.f32.mxu0 0.0
    %v596 = vand.u32 %v29, 4294901760
    %597 = vmatmul.mubr.f32.gmra.mxu0 %v596
    %v598 = vpop.f32.mrf.mxu0
    %v599 = vadd.f32 %v515, %v598
    %v600 = vpop.f32.mrf.mxu0
    %601 = vdwg.mxu0
    %603 = vrot.lane.b32.xlu0 %v593, 112
    %v604 = vpop.permute.xlu0 %603
    %vm605 = vcmask 130048
    %v606 = vsel %vm605, %v593, 0
    %v608 = vsel %vm605, %v604, 0
    %610 = vmatprep.subr.mxu0 0.0
    %611 = vmatpush1.xpose.msra.mxu0 0.0
    %612 = vmatprep.subr.mxu0 0.0
    %613 = vmatpush1.xpose.msra.mxu0 0.0
    %614 = vmatprep.subr.mxu0 0.0
    %615 = vmatpush1.xpose.msra.mxu0 0.0
    %616 = vmatprep.subr.mxu0 0.0
    %617 = vmatpush1.xpose.msra.mxu0 0.0
    %618 = vmatprep.subr.mxu0 0.0
    %619 = vmatpush1.xpose.msra.mxu0 0.0
    %620 = vmatprep.subr.mxu0 0.0
    %621 = vmatpush1.xpose.msra.mxu0 0.0
    %622 = vmatprep.subr.mxu0 0.0
    %623 = vmatpush1.xpose.msra.mxu0 0.0
    %624 = vmatprep.subr.mxu0 0.0
    %625 = vmatpush1.xpose.msra.mxu0 0.0
    %626 = vmatprep.subr.mxu0 0.0
    %627 = vmatpush1.xpose.msra.mxu0 0.0
    %628 = vmatprep.subr.mxu0 0.0
    %629 = vmatpush1.xpose.msra.mxu0 0.0
    %630 = vmatprep.subr.mxu0 0.0
    %631 = vmatpush1.xpose.msra.mxu0 0.0
    %632 = vmatprep.subr.mxu0 0.0
    %633 = vmatpush1.xpose.msra.mxu0 0.0
    %634 = vmatprep.subr.mxu0 0.0
    %635 = vmatpush1.xpose.msra.mxu0 0.0
    %636 = vmatprep.subr.mxu0 0.0
    %637 = vmatpush1.xpose.msra.mxu0 0.0
    %638 = vmatprep.subr.mxu0 0.0
    %639 = vmatpush1.xpose.msra.mxu0 0.0
    %640 = vmatprep.subr.mxu0 0.0
    %v641 = vand.u32 %v608, 4294901760
    %642 = vmatpush1.xpose.msra.mxu0 %v641
    %643 = vmatprep.subr.mxu0 0.0
    %644 = vmatpush2.xpose.msra.mxu0 0.0
    %645 = vmatprep.subr.mxu0 0.0
    %646 = vmatpush2.xpose.msra.mxu0 0.0
    %647 = vmatprep.subr.mxu0 0.0
    %648 = vmatpush2.xpose.msra.mxu0 0.0
    %649 = vmatprep.subr.mxu0 0.0
    %650 = vmatpush2.xpose.msra.mxu0 0.0
    %651 = vmatprep.subr.mxu0 0.0
    %652 = vmatpush2.xpose.msra.mxu0 0.0
    %653 = vmatprep.subr.mxu0 0.0
    %654 = vmatpush2.xpose.msra.mxu0 0.0
    %655 = vmatprep.subr.mxu0 0.0
    %656 = vmatpush2.xpose.msra.mxu0 0.0
    %657 = vmatprep.subr.mxu0 0.0
    %658 = vmatpush2.xpose.msra.mxu0 0.0
    %659 = vmatprep.subr.mxu0 0.0
    %660 = vmatpush2.xpose.msra.mxu0 0.0
    %661 = vmatprep.subr.mxu0 0.0
    %662 = vmatpush2.xpose.msra.mxu0 0.0
    %663 = vmatprep.subr.mxu0 0.0
    %664 = vmatpush2.xpose.msra.mxu0 0.0
    %665 = vmatprep.subr.mxu0 0.0
    %666 = vmatpush2.xpose.msra.mxu0 0.0
    %667 = vmatprep.subr.mxu0 0.0
    %668 = vmatpush2.xpose.msra.mxu0 0.0
    %669 = vmatprep.subr.mxu0 0.0
    %670 = vmatpush2.xpose.msra.mxu0 0.0
    %671 = vmatprep.subr.mxu0 0.0
    %672 = vmatpush2.xpose.msra.mxu0 0.0
    %673 = vmatprep.subr.mxu0 0.0
    %674 = vmatpush2.xpose.msra.mxu0 0.0
    %675 = vmatprep.mubr.f32.mxu0 0.0
    %v676 = vand.u32 %v606, 4294901760
    %v677 = vsub.f32 %v606, %v676
    %v678 = vand.u32 %v677, 4294901760
    %v679 = vsub.f32 %v677, %v678
    %v680 = vand.u32 %v679, 4294901760
    %681 = vmatmul.mubr.f32.gmra.mxu0 %v680
    %v682 = vpop.f32.mrf.mxu0
    %v683 = vadd.f32 0.0, %v682
    %v684 = vpop.f32.mrf.mxu0
    %685 = vdwg.mxu0
    %686 = vmatprep.subr.mxu0 0.0
    %687 = vmatpush1.xpose.msra.mxu0 0.0
    %688 = vmatprep.subr.mxu0 0.0
    %689 = vmatpush1.xpose.msra.mxu0 0.0
    %690 = vmatprep.subr.mxu0 0.0
    %691 = vmatpush1.xpose.msra.mxu0 0.0
    %692 = vmatprep.subr.mxu0 0.0
    %693 = vmatpush1.xpose.msra.mxu0 0.0
    %694 = vmatprep.subr.mxu0 0.0
    %695 = vmatpush1.xpose.msra.mxu0 0.0
    %696 = vmatprep.subr.mxu0 0.0
    %697 = vmatpush1.xpose.msra.mxu0 0.0
    %698 = vmatprep.subr.mxu0 0.0
    %699 = vmatpush1.xpose.msra.mxu0 0.0
    %700 = vmatprep.subr.mxu0 0.0
    %701 = vmatpush1.xpose.msra.mxu0 0.0
    %702 = vmatprep.subr.mxu0 0.0
    %703 = vmatpush1.xpose.msra.mxu0 0.0
    %704 = vmatprep.subr.mxu0 0.0
    %705 = vmatpush1.xpose.msra.mxu0 0.0
    %706 = vmatprep.subr.mxu0 0.0
    %707 = vmatpush1.xpose.msra.mxu0 0.0
    %708 = vmatprep.subr.mxu0 0.0
    %709 = vmatpush1.xpose.msra.mxu0 0.0
    %710 = vmatprep.subr.mxu0 0.0
    %711 = vmatpush1.xpose.msra.mxu0 0.0
    %712 = vmatprep.subr.mxu0 0.0
    %713 = vmatpush1.xpose.msra.mxu0 0.0
    %714 = vmatprep.subr.mxu0 0.0
    %715 = vmatpush1.xpose.msra.mxu0 0.0
    %716 = vmatprep.subr.mxu0 0.0
    %v717 = vand.u32 %v608, 4294901760
    %v718 = vsub.f32 %v608, %v717
    %v719 = vand.u32 %v718, 4294901760
    %v720 = vsub.f32 %v718, %v719
    %v721 = vand.u32 %v720, 4294901760
    %722 = vmatpush1.xpose.msra.mxu0 %v721
    %723 = vmatprep.subr.mxu0 0.0
    %724 = vmatpush2.xpose.msra.mxu0 0.0
    %725 = vmatprep.subr.mxu0 0.0
    %726 = vmatpush2.xpose.msra.mxu0 0.0
    %727 = vmatprep.subr.mxu0 0.0
    %728 = vmatpush2.xpose.msra.mxu0 0.0
    %729 = vmatprep.subr.mxu0 0.0
    %730 = vmatpush2.xpose.msra.mxu0 0.0
    %731 = vmatprep.subr.mxu0 0.0
    %732 = vmatpush2.xpose.msra.mxu0 0.0
    %733 = vmatprep.subr.mxu0 0.0
    %734 = vmatpush2.xpose.msra.mxu0 0.0
    %735 = vmatprep.subr.mxu0 0.0
    %736 = vmatpush2.xpose.msra.mxu0 0.0
    %737 = vmatprep.subr.mxu0 0.0
    %738 = vmatpush2.xpose.msra.mxu0 0.0
    %739 = vmatprep.subr.mxu0 0.0
    %740 = vmatpush2.xpose.msra.mxu0 0.0
    %741 = vmatprep.subr.mxu0 0.0
    %742 = vmatpush2.xpose.msra.mxu0 0.0
    %743 = vmatprep.subr.mxu0 0.0
    %744 = vmatpush2.xpose.msra.mxu0 0.0
    %745 = vmatprep.subr.mxu0 0.0
    %746 = vmatpush2.xpose.msra.mxu0 0.0
    %747 = vmatprep.subr.mxu0 0.0
    %748 = vmatpush2.xpose.msra.mxu0 0.0
    %749 = vmatprep.subr.mxu0 0.0
    %750 = vmatpush2.xpose.msra.mxu0 0.0
    %751 = vmatprep.subr.mxu0 0.0
    %752 = vmatpush2.xpose.msra.mxu0 0.0
    %753 = vmatprep.subr.mxu0 0.0
    %754 = vmatpush2.xpose.msra.mxu0 0.0
    %755 = vmatprep.mubr.f32.mxu0 0.0
    %v756 = vand.u32 %v606, 4294901760
    %757 = vmatmul.mubr.f32.gmra.mxu0 %v756
    %v758 = vpop.f32.mrf.mxu0
    %v759 = vadd.f32 %v683, %v758
    %v760 = vpop.f32.mrf.mxu0
    %761 = vdwg.mxu0
    %762 = vmatprep.subr.mxu0 0.0
    %763 = vmatpush1.xpose.msra.mxu0 0.0
    %764 = vmatprep.subr.mxu0 0.0
    %765 = vmatpush1.xpose.msra.mxu0 0.0
    %766 = vmatprep.subr.mxu0 0.0
    %767 = vmatpush1.xpose.msra.mxu0 0.0
    %768 = vmatprep.subr.mxu0 0.0
    %769 = vmatpush1.xpose.msra.mxu0 0.0
    %770 = vmatprep.subr.mxu0 0.0
    %771 = vmatpush1.xpose.msra.mxu0 0.0
    %772 = vmatprep.subr.mxu0 0.0
    %773 = vmatpush1.xpose.msra.mxu0 0.0
    %774 = vmatprep.subr.mxu0 0.0
    %775 = vmatpush1.xpose.msra.mxu0 0.0
    %776 = vmatprep.subr.mxu0 0.0
    %777 = vmatpush1.xpose.msra.mxu0 0.0
    %778 = vmatprep.subr.mxu0 0.0
    %779 = vmatpush1.xpose.msra.mxu0 0.0
    %780 = vmatprep.subr.mxu0 0.0
    %781 = vmatpush1.xpose.msra.mxu0 0.0
    %782 = vmatprep.subr.mxu0 0.0
    %783 = vmatpush1.xpose.msra.mxu0 0.0
    %784 = vmatprep.subr.mxu0 0.0
    %785 = vmatpush1.xpose.msra.mxu0 0.0
    %786 = vmatprep.subr.mxu0 0.0
    %787 = vmatpush1.xpose.msra.mxu0 0.0
    %788 = vmatprep.subr.mxu0 0.0
    %789 = vmatpush1.xpose.msra.mxu0 0.0
    %790 = vmatprep.subr.mxu0 0.0
    %791 = vmatpush1.xpose.msra.mxu0 0.0
    %792 = vmatprep.subr.mxu0 0.0
    %v793 = vand.u32 %v608, 4294901760
    %v794 = vsub.f32 %v608, %v793
    %795 = vmatpush1.xpose.msra.mxu0 %v794
    %796 = vmatprep.subr.mxu0 0.0
    %797 = vmatpush2.xpose.msra.mxu0 0.0
    %798 = vmatprep.subr.mxu0 0.0
    %799 = vmatpush2.xpose.msra.mxu0 0.0
    %800 = vmatprep.subr.mxu0 0.0
    %801 = vmatpush2.xpose.msra.mxu0 0.0
    %802 = vmatprep.subr.mxu0 0.0
    %803 = vmatpush2.xpose.msra.mxu0 0.0
    %804 = vmatprep.subr.mxu0 0.0
    %805 = vmatpush2.xpose.msra.mxu0 0.0
    %806 = vmatprep.subr.mxu0 0.0
    %807 = vmatpush2.xpose.msra.mxu0 0.0
    %808 = vmatprep.subr.mxu0 0.0
    %809 = vmatpush2.xpose.msra.mxu0 0.0
    %810 = vmatprep.subr.mxu0 0.0
    %811 = vmatpush2.xpose.msra.mxu0 0.0
    %812 = vmatprep.subr.mxu0 0.0
    %813 = vmatpush2.xpose.msra.mxu0 0.0
    %814 = vmatprep.subr.mxu0 0.0
    %815 = vmatpush2.xpose.msra.mxu0 0.0
    %816 = vmatprep.subr.mxu0 0.0
    %817 = vmatpush2.xpose.msra.mxu0 0.0
    %818 = vmatprep.subr.mxu0 0.0
    %819 = vmatpush2.xpose.msra.mxu0 0.0
    %820 = vmatprep.subr.mxu0 0.0
    %821 = vmatpush2.xpose.msra.mxu0 0.0
    %822 = vmatprep.subr.mxu0 0.0
    %823 = vmatpush2.xpose.msra.mxu0 0.0
    %824 = vmatprep.subr.mxu0 0.0
    %825 = vmatpush2.xpose.msra.mxu0 0.0
    %826 = vmatprep.subr.mxu0 0.0
    %827 = vmatpush2.xpose.msra.mxu0 0.0
    %828 = vmatprep.mubr.f32.mxu0 0.0
    %v829 = vand.u32 %v606, 4294901760
    %v830 = vsub.f32 %v606, %v829
    %831 = vmatmul.mubr.f32.gmra.mxu0 %v830
    %v832 = vpop.f32.mrf.mxu0
    %v833 = vadd.f32 %v759, %v832
    %v834 = vpop.f32.mrf.mxu0
    %835 = vdwg.mxu0
    %836 = vmatprep.subr.mxu0 0.0
    %837 = vmatpush1.xpose.msra.mxu0 0.0
    %838 = vmatprep.subr.mxu0 0.0
    %839 = vmatpush1.xpose.msra.mxu0 0.0
    %840 = vmatprep.subr.mxu0 0.0
    %841 = vmatpush1.xpose.msra.mxu0 0.0
    %842 = vmatprep.subr.mxu0 0.0
    %843 = vmatpush1.xpose.msra.mxu0 0.0
    %844 = vmatprep.subr.mxu0 0.0
    %845 = vmatpush1.xpose.msra.mxu0 0.0
    %846 = vmatprep.subr.mxu0 0.0
    %847 = vmatpush1.xpose.msra.mxu0 0.0
    %848 = vmatprep.subr.mxu0 0.0
    %849 = vmatpush1.xpose.msra.mxu0 0.0
    %850 = vmatprep.subr.mxu0 0.0
    %851 = vmatpush1.xpose.msra.mxu0 0.0
    %852 = vmatprep.subr.mxu0 0.0
    %853 = vmatpush1.xpose.msra.mxu0 0.0
    %854 = vmatprep.subr.mxu0 0.0
    %855 = vmatpush1.xpose.msra.mxu0 0.0
    %856 = vmatprep.subr.mxu0 0.0
    %857 = vmatpush1.xpose.msra.mxu0 0.0
    %858 = vmatprep.subr.mxu0 0.0
    %859 = vmatpush1.xpose.msra.mxu0 0.0
    %860 = vmatprep.subr.mxu0 0.0
    %861 = vmatpush1.xpose.msra.mxu0 0.0
    %862 = vmatprep.subr.mxu0 0.0
    %863 = vmatpush1.xpose.msra.mxu0 0.0
    %864 = vmatprep.subr.mxu0 0.0
    %865 = vmatpush1.xpose.msra.mxu0 0.0
    %866 = vmatprep.subr.mxu0 0.0
    %v867 = vand.u32 %v608, 4294901760
    %868 = vmatpush1.xpose.msra.mxu0 %v867
    %869 = vmatprep.subr.mxu0 0.0
    %870 = vmatpush2.xpose.msra.mxu0 0.0
    %871 = vmatprep.subr.mxu0 0.0
    %872 = vmatpush2.xpose.msra.mxu0 0.0
    %873 = vmatprep.subr.mxu0 0.0
    %874 = vmatpush2.xpose.msra.mxu0 0.0
    %875 = vmatprep.subr.mxu0 0.0
    %876 = vmatpush2.xpose.msra.mxu0 0.0
    %877 = vmatprep.subr.mxu0 0.0
    %878 = vmatpush2.xpose.msra.mxu0 0.0
    %879 = vmatprep.subr.mxu0 0.0
    %880 = vmatpush2.xpose.msra.mxu0 0.0
    %881 = vmatprep.subr.mxu0 0.0
    %882 = vmatpush2.xpose.msra.mxu0 0.0
    %883 = vmatprep.subr.mxu0 0.0
    %884 = vmatpush2.xpose.msra.mxu0 0.0
    %885 = vmatprep.subr.mxu0 0.0
    %886 = vmatpush2.xpose.msra.mxu0 0.0
    %887 = vmatprep.subr.mxu0 0.0
    %888 = vmatpush2.xpose.msra.mxu0 0.0
    %889 = vmatprep.subr.mxu0 0.0
    %890 = vmatpush2.xpose.msra.mxu0 0.0
    %891 = vmatprep.subr.mxu0 0.0
    %892 = vmatpush2.xpose.msra.mxu0 0.0
    %893 = vmatprep.subr.mxu0 0.0
    %894 = vmatpush2.xpose.msra.mxu0 0.0
    %895 = vmatprep.subr.mxu0 0.0
    %896 = vmatpush2.xpose.msra.mxu0 0.0
    %897 = vmatprep.subr.mxu0 0.0
    %898 = vmatpush2.xpose.msra.mxu0 0.0
    %899 = vmatprep.subr.mxu0 0.0
    %900 = vmatpush2.xpose.msra.mxu0 0.0
    %901 = vmatprep.mubr.f32.mxu0 0.0
    %v902 = vand.u32 %v606, 4294901760
    %v903 = vsub.f32 %v606, %v902
    %v904 = vand.u32 %v903, 4294901760
    %905 = vmatmul.mubr.f32.gmra.mxu0 %v904
    %v906 = vpop.f32.mrf.mxu0
    %v907 = vadd.f32 %v833, %v906
    %v908 = vpop.f32.mrf.mxu0
    %909 = vdwg.mxu0
    %910 = vmatprep.subr.mxu0 0.0
    %911 = vmatpush1.xpose.msra.mxu0 0.0
    %912 = vmatprep.subr.mxu0 0.0
    %913 = vmatpush1.xpose.msra.mxu0 0.0
    %914 = vmatprep.subr.mxu0 0.0
    %915 = vmatpush1.xpose.msra.mxu0 0.0
    %916 = vmatprep.subr.mxu0 0.0
    %917 = vmatpush1.xpose.msra.mxu0 0.0
    %918 = vmatprep.subr.mxu0 0.0
    %919 = vmatpush1.xpose.msra.mxu0 0.0
    %920 = vmatprep.subr.mxu0 0.0
    %921 = vmatpush1.xpose.msra.mxu0 0.0
    %922 = vmatprep.subr.mxu0 0.0
    %923 = vmatpush1.xpose.msra.mxu0 0.0
    %924 = vmatprep.subr.mxu0 0.0
    %925 = vmatpush1.xpose.msra.mxu0 0.0
    %926 = vmatprep.subr.mxu0 0.0
    %927 = vmatpush1.xpose.msra.mxu0 0.0
    %928 = vmatprep.subr.mxu0 0.0
    %929 = vmatpush1.xpose.msra.mxu0 0.0
    %930 = vmatprep.subr.mxu0 0.0
    %931 = vmatpush1.xpose.msra.mxu0 0.0
    %932 = vmatprep.subr.mxu0 0.0
    %933 = vmatpush1.xpose.msra.mxu0 0.0
    %934 = vmatprep.subr.mxu0 0.0
    %935 = vmatpush1.xpose.msra.mxu0 0.0
    %936 = vmatprep.subr.mxu0 0.0
    %937 = vmatpush1.xpose.msra.mxu0 0.0
    %938 = vmatprep.subr.mxu0 0.0
    %939 = vmatpush1.xpose.msra.mxu0 0.0
    %940 = vmatprep.subr.mxu0 0.0
    %v941 = vand.u32 %v608, 4294901760
    %v942 = vsub.f32 %v608, %v941
    %v943 = vand.u32 %v942, 4294901760
    %944 = vmatpush1.xpose.msra.mxu0 %v943
    %945 = vmatprep.subr.mxu0 0.0
    %946 = vmatpush2.xpose.msra.mxu0 0.0
    %947 = vmatprep.subr.mxu0 0.0
    %948 = vmatpush2.xpose.msra.mxu0 0.0
    %949 = vmatprep.subr.mxu0 0.0
    %950 = vmatpush2.xpose.msra.mxu0 0.0
    %951 = vmatprep.subr.mxu0 0.0
    %952 = vmatpush2.xpose.msra.mxu0 0.0
    %953 = vmatprep.subr.mxu0 0.0
    %954 = vmatpush2.xpose.msra.mxu0 0.0
    %955 = vmatprep.subr.mxu0 0.0
    %956 = vmatpush2.xpose.msra.mxu0 0.0
    %957 = vmatprep.subr.mxu0 0.0
    %958 = vmatpush2.xpose.msra.mxu0 0.0
    %959 = vmatprep.subr.mxu0 0.0
    %960 = vmatpush2.xpose.msra.mxu0 0.0
    %961 = vmatprep.subr.mxu0 0.0
    %962 = vmatpush2.xpose.msra.mxu0 0.0
    %963 = vmatprep.subr.mxu0 0.0
    %964 = vmatpush2.xpose.msra.mxu0 0.0
    %965 = vmatprep.subr.mxu0 0.0
    %966 = vmatpush2.xpose.msra.mxu0 0.0
    %967 = vmatprep.subr.mxu0 0.0
    %968 = vmatpush2.xpose.msra.mxu0 0.0
    %969 = vmatprep.subr.mxu0 0.0
    %970 = vmatpush2.xpose.msra.mxu0 0.0
    %971 = vmatprep.subr.mxu0 0.0
    %972 = vmatpush2.xpose.msra.mxu0 0.0
    %973 = vmatprep.subr.mxu0 0.0
    %974 = vmatpush2.xpose.msra.mxu0 0.0
    %975 = vmatprep.subr.mxu0 0.0
    %976 = vmatpush2.xpose.msra.mxu0 0.0
    %977 = vmatprep.mubr.f32.mxu0 0.0
    %v978 = vand.u32 %v606, 4294901760
    %979 = vmatmul.mubr.f32.gmra.mxu0 %v978
    %v980 = vpop.f32.mrf.mxu0
    %v981 = vadd.f32 %v907, %v980
    %v982 = vpop.f32.mrf.mxu0
    %983 = vdwg.mxu0
    %984 = vmatprep.subr.mxu0 0.0
    %985 = vmatpush1.xpose.msra.mxu0 0.0
    %986 = vmatprep.subr.mxu0 0.0
    %987 = vmatpush1.xpose.msra.mxu0 0.0
    %988 = vmatprep.subr.mxu0 0.0
    %989 = vmatpush1.xpose.msra.mxu0 0.0
    %990 = vmatprep.subr.mxu0 0.0
    %991 = vmatpush1.xpose.msra.mxu0 0.0
    %992 = vmatprep.subr.mxu0 0.0
    %993 = vmatpush1.xpose.msra.mxu0 0.0
    %994 = vmatprep.subr.mxu0 0.0
    %995 = vmatpush1.xpose.msra.mxu0 0.0
    %996 = vmatprep.subr.mxu0 0.0
    %997 = vmatpush1.xpose.msra.mxu0 0.0
    %998 = vmatprep.subr.mxu0 0.0
    %999 = vmatpush1.xpose.msra.mxu0 0.0
    %1000 = vmatprep.subr.mxu0 0.0
    %1001 = vmatpush1.xpose.msra.mxu0 0.0
    %1002 = vmatprep.subr.mxu0 0.0
    %1003 = vmatpush1.xpose.msra.mxu0 0.0
    %1004 = vmatprep.subr.mxu0 0.0
    %1005 = vmatpush1.xpose.msra.mxu0 0.0
    %1006 = vmatprep.subr.mxu0 0.0
    %1007 = vmatpush1.xpose.msra.mxu0 0.0
    %1008 = vmatprep.subr.mxu0 0.0
    %1009 = vmatpush1.xpose.msra.mxu0 0.0
    %1010 = vmatprep.subr.mxu0 0.0
    %1011 = vmatpush1.xpose.msra.mxu0 0.0
    %1012 = vmatprep.subr.mxu0 0.0
    %1013 = vmatpush1.xpose.msra.mxu0 0.0
    %1014 = vmatprep.subr.mxu0 0.0
    %v1015 = vand.u32 %v608, 4294901760
    %1016 = vmatpush1.xpose.msra.mxu0 %v1015
    %1017 = vmatprep.subr.mxu0 0.0
    %1018 = vmatpush2.xpose.msra.mxu0 0.0
    %1019 = vmatprep.subr.mxu0 0.0
    %1020 = vmatpush2.xpose.msra.mxu0 0.0
    %1021 = vmatprep.subr.mxu0 0.0
    %1022 = vmatpush2.xpose.msra.mxu0 0.0
    %1023 = vmatprep.subr.mxu0 0.0
    %1024 = vmatpush2.xpose.msra.mxu0 0.0
    %1025 = vmatprep.subr.mxu0 0.0
    %1026 = vmatpush2.xpose.msra.mxu0 0.0
    %1027 = vmatprep.subr.mxu0 0.0
    %1028 = vmatpush2.xpose.msra.mxu0 0.0
    %1029 = vmatprep.subr.mxu0 0.0
    %1030 = vmatpush2.xpose.msra.mxu0 0.0
    %1031 = vmatprep.subr.mxu0 0.0
    %1032 = vmatpush2.xpose.msra.mxu0 0.0
    %1033 = vmatprep.subr.mxu0 0.0
    %1034 = vmatpush2.xpose.msra.mxu0 0.0
    %1035 = vmatprep.subr.mxu0 0.0
    %1036 = vmatpush2.xpose.msra.mxu0 0.0
    %1037 = vmatprep.subr.mxu0 0.0
    %1038 = vmatpush2.xpose.msra.mxu0 0.0
    %1039 = vmatprep.subr.mxu0 0.0
    %1040 = vmatpush2.xpose.msra.mxu0 0.0
    %1041 = vmatprep.subr.mxu0 0.0
    %1042 = vmatpush2.xpose.msra.mxu0 0.0
    %1043 = vmatprep.subr.mxu0 0.0
    %1044 = vmatpush2.xpose.msra.mxu0 0.0
    %1045 = vmatprep.subr.mxu0 0.0
    %1046 = vmatpush2.xpose.msra.mxu0 0.0
    %1047 = vmatprep.subr.mxu0 0.0
    %1048 = vmatpush2.xpose.msra.mxu0 0.0
    %1049 = vmatprep.mubr.f32.mxu0 0.0
    %v1050 = vand.u32 %v606, 4294901760
    %1051 = vmatmul.mubr.f32.gmra.mxu0 %v1050
    %v1052 = vpop.f32.mrf.mxu0
    %v1053 = vadd.f32 %v981, %v1052
    %v1054 = vpop.f32.mrf.mxu0
    %1055 = vdwg.mxu0
    %vm1056 = vcmask 64512
    %v1057 = vsel %vm1056, %v1053, -inf
    %1058 = vmax.xlane.f32.xlu0 %v1057
    %v1059 = vpop.xlane.xlu0 %1058
    %v1060 = vsub.f32 %v1053, %v1059
    %v1061 = vmul.f32 %v1060, 1.442695
    %v1062 = vpow.pop %v1061
    %v1063 = vsel %vm1056, %v1062, 0.0
    %1064 = vadd.xlane.f32.xlu0 %v1063
    %v1065 = vpop.xlane.xlu0 %1064
    %v1066 = vrcp.pop %v1065
    %v1067 = vmul.f32 %v1062, %v1066
    %1068 = vrot.lane.b32.xlu0 %v593, 96
    %v1069 = vpop.permute.xlu0 %1068
    %v1072 = vsel %vm1056, %v1067, 0
    %1074 = vmatprep.subr.mxu0 0.0
    %1075 = vmatpush1.msra.mxu0 0.0
    %1076 = vmatprep.subr.mxu0 0.0
    %1077 = vmatpush1.msra.mxu0 0.0
    %1078 = vmatprep.subr.mxu0 0.0
    %1079 = vmatpush1.msra.mxu0 0.0
    %1080 = vmatprep.subr.mxu0 0.0
    %1081 = vmatpush1.msra.mxu0 0.0
    %1082 = vmatprep.subr.mxu0 0.0
    %1083 = vmatpush1.msra.mxu0 0.0
    %1084 = vmatprep.subr.mxu0 0.0
    %1085 = vmatpush1.msra.mxu0 0.0
    %1086 = vmatprep.subr.mxu0 0.0
    %1087 = vmatpush1.msra.mxu0 0.0
    %1088 = vmatprep.subr.mxu0 0.0
    %1089 = vmatpush1.msra.mxu0 0.0
    %1090 = vmatprep.subr.mxu0 0.0
    %1091 = vmatpush1.msra.mxu0 0.0
    %1092 = vmatprep.subr.mxu0 0.0
    %1093 = vmatpush1.msra.mxu0 0.0
    %1094 = vmatprep.subr.mxu0 0.0
    %1095 = vmatpush1.msra.mxu0 0.0
    %1096 = vmatprep.subr.mxu0 0.0
    %1097 = vmatpush1.msra.mxu0 0.0
    %1098 = vmatprep.subr.mxu0 0.0
    %1099 = vmatpush1.msra.mxu0 0.0
    %1100 = vmatprep.subr.mxu0 0.0
    %1101 = vmatpush1.msra.mxu0 0.0
    %1102 = vmatprep.subr.mxu0 0.0
    %1103 = vmatpush1.msra.mxu0 0.0
    %1104 = vmatprep.subr.mxu0 0.0
    %v1105 = vand.u32 %v1069, 4294901760
    %1106 = vmatpush1.msra.mxu0 %v1105
    %1107 = vmatprep.subr.mxu0 0.0
    %1108 = vmatpush2.msra.mxu0 0.0
    %1109 = vmatprep.subr.mxu0 0.0
    %1110 = vmatpush2.msra.mxu0 0.0
    %1111 = vmatprep.subr.mxu0 0.0
    %1112 = vmatpush2.msra.mxu0 0.0
    %1113 = vmatprep.subr.mxu0 0.0
    %1114 = vmatpush2.msra.mxu0 0.0
    %1115 = vmatprep.subr.mxu0 0.0
    %1116 = vmatpush2.msra.mxu0 0.0
    %1117 = vmatprep.subr.mxu0 0.0
    %1118 = vmatpush2.msra.mxu0 0.0
    %1119 = vmatprep.subr.mxu0 0.0
    %1120 = vmatpush2.msra.mxu0 0.0
    %1121 = vmatprep.subr.mxu0 0.0
    %1122 = vmatpush2.msra.mxu0 0.0
    %1123 = vmatprep.subr.mxu0 0.0
    %1124 = vmatpush2.msra.mxu0 0.0
    %1125 = vmatprep.subr.mxu0 0.0
    %1126 = vmatpush2.msra.mxu0 0.0
    %1127 = vmatprep.subr.mxu0 0.0
    %1128 = vmatpush2.msra.mxu0 0.0
    %1129 = vmatprep.subr.mxu0 0.0
    %1130 = vmatpush2.msra.mxu0 0.0
    %1131 = vmatprep.subr.mxu0 0.0
    %1132 = vmatpush2.msra.mxu0 0.0
    %1133 = vmatprep.subr.mxu0 0.0
    %1134 = vmatpush2.msra.mxu0 0.0
    %1135 = vmatprep.subr.mxu0 0.0
    %1136 = vmatpush2.msra.mxu0 0.0
    %1137 = vmatprep.subr.mxu0 0.0
    %1138 = vmatpush2.msra.mxu0 0.0
    %1139 = vmatprep.mubr.f32.mxu0 0.0
    %v1140 = vand.u32 %v1072, 4294901760
    %v1141 = vsub.f32 %v1072, %v1140
    %v1142 = vand.u32 %v1141, 4294901760
    %v1143 = vsub.f32 %v1141, %v1142
    %v1144 = vand.u32 %v1143, 4294901760
    %1145 = vmatmul.mubr.f32.gmra.mxu0 %v1144
    %v1146 = vpop.f32.mrf.mxu0
    %v1147 = vadd.f32 0.0, %v1146
    %v1148 = vpop.f32.mrf.mxu0
    %1149 = vdwg.mxu0
    %1150 = vmatprep.subr.mxu0 0.0
    %1151 = vmatpush1.msra.mxu0 0.0
    %1152 = vmatprep.subr.mxu0 0.0
    %1153 = vmatpush1.msra.mxu0 0.0
    %1154 = vmatprep.subr.mxu0 0.0
    %1155 = vmatpush1.msra.mxu0 0.0
    %1156 = vmatprep.subr.mxu0 0.0
    %1157 = vmatpush1.msra.mxu0 0.0
    %1158 = vmatprep.subr.mxu0 0.0
    %1159 = vmatpush1.msra.mxu0 0.0
    %1160 = vmatprep.subr.mxu0 0.0
    %1161 = vmatpush1.msra.mxu0 0.0
    %1162 = vmatprep.subr.mxu0 0.0
    %1163 = vmatpush1.msra.mxu0 0.0
    %1164 = vmatprep.subr.mxu0 0.0
    %1165 = vmatpush1.msra.mxu0 0.0
    %1166 = vmatprep.subr.mxu0 0.0
    %1167 = vmatpush1.msra.mxu0 0.0
    %1168 = vmatprep.subr.mxu0 0.0
    %1169 = vmatpush1.msra.mxu0 0.0
    %1170 = vmatprep.subr.mxu0 0.0
    %1171 = vmatpush1.msra.mxu0 0.0
    %1172 = vmatprep.subr.mxu0 0.0
    %1173 = vmatpush1.msra.mxu0 0.0
    %1174 = vmatprep.subr.mxu0 0.0
    %1175 = vmatpush1.msra.mxu0 0.0
    %1176 = vmatprep.subr.mxu0 0.0
    %1177 = vmatpush1.msra.mxu0 0.0
    %1178 = vmatprep.subr.mxu0 0.0
    %1179 = vmatpush1.msra.mxu0 0.0
    %1180 = vmatprep.subr.mxu0 0.0
    %v1181 = vand.u32 %v1069, 4294901760
    %v1182 = vsub.f32 %v1069, %v1181
    %v1183 = vand.u32 %v1182, 4294901760
    %v1184 = vsub.f32 %v1182, %v1183
    %v1185 = vand.u32 %v1184, 4294901760
    %1186 = vmatpush1.msra.mxu0 %v1185
    %1187 = vmatprep.subr.mxu0 0.0
    %1188 = vmatpush2.msra.mxu0 0.0
    %1189 = vmatprep.subr.mxu0 0.0
    %1190 = vmatpush2.msra.mxu0 0.0
    %1191 = vmatprep.subr.mxu0 0.0
    %1192 = vmatpush2.msra.mxu0 0.0
    %1193 = vmatprep.subr.mxu0 0.0
    %1194 = vmatpush2.msra.mxu0 0.0
    %1195 = vmatprep.subr.mxu0 0.0
    %1196 = vmatpush2.msra.mxu0 0.0
    %1197 = vmatprep.subr.mxu0 0.0
    %1198 = vmatpush2.msra.mxu0 0.0
    %1199 = vmatprep.subr.mxu0 0.0
    %1200 = vmatpush2.msra.mxu0 0.0
    %1201 = vmatprep.subr.mxu0 0.0
    %1202 = vmatpush2.msra.mxu0 0.0
    %1203 = vmatprep.subr.mxu0 0.0
    %1204 = vmatpush2.msra.mxu0 0.0
    %1205 = vmatprep.subr.mxu0 0.0
    %1206 = vmatpush2.msra.mxu0 0.0
    %1207 = vmatprep.subr.mxu0 0.0
    %1208 = vmatpush2.msra.mxu0 0.0
    %1209 = vmatprep.subr.mxu0 0.0
    %1210 = vmatpush2.msra.mxu0 0.0
    %1211 = vmatprep.subr.mxu0 0.0
    %1212 = vmatpush2.msra.mxu0 0.0
    %1213 = vmatprep.subr.mxu0 0.0
    %1214 = vmatpush2.msra.mxu0 0.0
    %1215 = vmatprep.subr.mxu0 0.0
    %1216 = vmatpush2.msra.mxu0 0.0
    %1217 = vmatprep.subr.mxu0 0.0
    %1218 = vmatpush2.msra.mxu0 0.0
    %1219 = vmatprep.mubr.f32.mxu0 0.0
    %v1220 = vand.u32 %v1072, 4294901760
    %1221 = vmatmul.mubr.f32.gmra.mxu0 %v1220
    %v1222 = vpop.f32.mrf.mxu0
    %v1223 = vadd.f32 %v1147, %v1222
    %v1224 = vpop.f32.mrf.mxu0
    %1225 = vdwg.mxu0
    %1226 = vmatprep.subr.mxu0 0.0
    %1227 = vmatpush1.msra.mxu0 0.0
    %1228 = vmatprep.subr.mxu0 0.0
    %1229 = vmatpush1.msra.mxu0 0.0
    %1230 = vmatprep.subr.mxu0 0.0
    %1231 = vmatpush1.msra.mxu0 0.0
    %1232 = vmatprep.subr.mxu0 0.0
    %1233 = vmatpush1.msra.mxu0 0.0
    %1234 = vmatprep.subr.mxu0 0.0
    %1235 = vmatpush1.msra.mxu0 0.0
    %1236 = vmatprep.subr.mxu0 0.0
    %1237 = vmatpush1.msra.mxu0 0.0
    %1238 = vmatprep.subr.mxu0 0.0
    %1239 = vmatpush1.msra.mxu0 0.0
    %1240 = vmatprep.subr.mxu0 0.0
    %1241 = vmatpush1.msra.mxu0 0.0
    %1242 = vmatprep.subr.mxu0 0.0
    %1243 = vmatpush1.msra.mxu0 0.0
    %1244 = vmatprep.subr.mxu0 0.0
    %1245 = vmatpush1.msra.mxu0 0.0
    %1246 = vmatprep.subr.mxu0 0.0
    %1247 = vmatpush1.msra.mxu0 0.0
    %1248 = vmatprep.subr.mxu0 0.0
    %1249 = vmatpush1.msra.mxu0 0.0
    %1250 = vmatprep.subr.mxu0 0.0
    %1251 = vmatpush1.msra.mxu0 0.0
    %1252 = vmatprep.subr.mxu0 0.0
    %1253 = vmatpush1.msra.mxu0 0.0
    %1254 = vmatprep.subr.mxu0 0.0
    %1255 = vmatpush1.msra.mxu0 0.0
    %1256 = vmatprep.subr.mxu0 0.0
    %v1257 = vand.u32 %v1069, 4294901760
    %v1258 = vsub.f32 %v1069, %v1257
    %1259 = vmatpush1.msra.mxu0 %v1258
    %1260 = vmatprep.subr.mxu0 0.0
    %1261 = vmatpush2.msra.mxu0 0.0
    %1262 = vmatprep.subr.mxu0 0.0
    %1263 = vmatpush2.msra.mxu0 0.0
    %1264 = vmatprep.subr.mxu0 0.0
    %1265 = vmatpush2.msra.mxu0 0.0
    %1266 = vmatprep.subr.mxu0 0.0
    %1267 = vmatpush2.msra.mxu0 0.0
    %1268 = vmatprep.subr.mxu0 0.0
    %1269 = vmatpush2.msra.mxu0 0.0
    %1270 = vmatprep.subr.mxu0 0.0
    %1271 = vmatpush2.msra.mxu0 0.0
    %1272 = vmatprep.subr.mxu0 0.0
    %1273 = vmatpush2.msra.mxu0 0.0
    %1274 = vmatprep.subr.mxu0 0.0
    %1275 = vmatpush2.msra.mxu0 0.0
    %1276 = vmatprep.subr.mxu0 0.0
    %1277 = vmatpush2.msra.mxu0 0.0
    %1278 = vmatprep.subr.mxu0 0.0
    %1279 = vmatpush2.msra.mxu0 0.0
    %1280 = vmatprep.subr.mxu0 0.0
    %1281 = vmatpush2.msra.mxu0 0.0
    %1282 = vmatprep.subr.mxu0 0.0
    %1283 = vmatpush2.msra.mxu0 0.0
    %1284 = vmatprep.subr.mxu0 0.0
    %1285 = vmatpush2.msra.mxu0 0.0
    %1286 = vmatprep.subr.mxu0 0.0
    %1287 = vmatpush2.msra.mxu0 0.0
    %1288 = vmatprep.subr.mxu0 0.0
    %1289 = vmatpush2.msra.mxu0 0.0
    %1290 = vmatprep.subr.mxu0 0.0
    %1291 = vmatpush2.msra.mxu0 0.0
    %1292 = vmatprep.mubr.f32.mxu0 0.0
    %v1293 = vand.u32 %v1072, 4294901760
    %v1294 = vsub.f32 %v1072, %v1293
    %1295 = vmatmul.mubr.f32.gmra.mxu0 %v1294
    %v1296 = vpop.f32.mrf.mxu0
    %v1297 = vadd.f32 %v1223, %v1296
    %v1298 = vpop.f32.mrf.mxu0
    %1299 = vdwg.mxu0
    %1300 = vmatprep.subr.mxu0 0.0
    %1301 = vmatpush1.msra.mxu0 0.0
    %1302 = vmatprep.subr.mxu0 0.0
    %1303 = vmatpush1.msra.mxu0 0.0
    %1304 = vmatprep.subr.mxu0 0.0
    %1305 = vmatpush1.msra.mxu0 0.0
    %1306 = vmatprep.subr.mxu0 0.0
    %1307 = vmatpush1.msra.mxu0 0.0
    %1308 = vmatprep.subr.mxu0 0.0
    %1309 = vmatpush1.msra.mxu0 0.0
    %1310 = vmatprep.subr.mxu0 0.0
    %1311 = vmatpush1.msra.mxu0 0.0
    %1312 = vmatprep.subr.mxu0 0.0
    %1313 = vmatpush1.msra.mxu0 0.0
    %1314 = vmatprep.subr.mxu0 0.0
    %1315 = vmatpush1.msra.mxu0 0.0
    %1316 = vmatprep.subr.mxu0 0.0
    %1317 = vmatpush1.msra.mxu0 0.0
    %1318 = vmatprep.subr.mxu0 0.0
    %1319 = vmatpush1.msra.mxu0 0.0
    %1320 = vmatprep.subr.mxu0 0.0
    %1321 = vmatpush1.msra.mxu0 0.0
    %1322 = vmatprep.subr.mxu0 0.0
    %1323 = vmatpush1.msra.mxu0 0.0
    %1324 = vmatprep.subr.mxu0 0.0
    %1325 = vmatpush1.msra.mxu0 0.0
    %1326 = vmatprep.subr.mxu0 0.0
    %1327 = vmatpush1.msra.mxu0 0.0
    %1328 = vmatprep.subr.mxu0 0.0
    %1329 = vmatpush1.msra.mxu0 0.0
    %1330 = vmatprep.subr.mxu0 0.0
    %v1331 = vand.u32 %v1069, 4294901760
    %1332 = vmatpush1.msra.mxu0 %v1331
    %1333 = vmatprep.subr.mxu0 0.0
    %1334 = vmatpush2.msra.mxu0 0.0
    %1335 = vmatprep.subr.mxu0 0.0
    %1336 = vmatpush2.msra.mxu0 0.0
    %1337 = vmatprep.subr.mxu0 0.0
    %1338 = vmatpush2.msra.mxu0 0.0
    %1339 = vmatprep.subr.mxu0 0.0
    %1340 = vmatpush2.msra.mxu0 0.0
    %1341 = vmatprep.subr.mxu0 0.0
    %1342 = vmatpush2.msra.mxu0 0.0
    %1343 = vmatprep.subr.mxu0 0.0
    %1344 = vmatpush2.msra.mxu0 0.0
    %1345 = vmatprep.subr.mxu0 0.0
    %1346 = vmatpush2.msra.mxu0 0.0
    %1347 = vmatprep.subr.mxu0 0.0
    %1348 = vmatpush2.msra.mxu0 0.0
    %1349 = vmatprep.subr.mxu0 0.0
    %1350 = vmatpush2.msra.mxu0 0.0
    %1351 = vmatprep.subr.mxu0 0.0
    %1352 = vmatpush2.msra.mxu0 0.0
    %1353 = vmatprep.subr.mxu0 0.0
    %1354 = vmatpush2.msra.mxu0 0.0
    %1355 = vmatprep.subr.mxu0 0.0
    %1356 = vmatpush2.msra.mxu0 0.0
    %1357 = vmatprep.subr.mxu0 0.0
    %1358 = vmatpush2.msra.mxu0 0.0
    %1359 = vmatprep.subr.mxu0 0.0
    %1360 = vmatpush2.msra.mxu0 0.0
    %1361 = vmatprep.subr.mxu0 0.0
    %1362 = vmatpush2.msra.mxu0 0.0
    %1363 = vmatprep.subr.mxu0 0.0
    %1364 = vmatpush2.msra.mxu0 0.0
    %1365 = vmatprep.mubr.f32.mxu0 0.0
    %v1366 = vand.u32 %v1072, 4294901760
    %v1367 = vsub.f32 %v1072, %v1366
    %v1368 = vand.u32 %v1367, 4294901760
    %1369 = vmatmul.mubr.f32.gmra.mxu0 %v1368
    %v1370 = vpop.f32.mrf.mxu0
    %v1371 = vadd.f32 %v1297, %v1370
    %v1372 = vpop.f32.mrf.mxu0
    %1373 = vdwg.mxu0
    %1374 = vmatprep.subr.mxu0 0.0
    %1375 = vmatpush1.msra.mxu0 0.0
    %1376 = vmatprep.subr.mxu0 0.0
    %1377 = vmatpush1.msra.mxu0 0.0
    %1378 = vmatprep.subr.mxu0 0.0
    %1379 = vmatpush1.msra.mxu0 0.0
    %1380 = vmatprep.subr.mxu0 0.0
    %1381 = vmatpush1.msra.mxu0 0.0
    %1382 = vmatprep.subr.mxu0 0.0
    %1383 = vmatpush1.msra.mxu0 0.0
    %1384 = vmatprep.subr.mxu0 0.0
    %1385 = vmatpush1.msra.mxu0 0.0
    %1386 = vmatprep.subr.mxu0 0.0
    %1387 = vmatpush1.msra.mxu0 0.0
    %1388 = vmatprep.subr.mxu0 0.0
    %1389 = vmatpush1.msra.mxu0 0.0
    %1390 = vmatprep.subr.mxu0 0.0
    %1391 = vmatpush1.msra.mxu0 0.0
    %1392 = vmatprep.subr.mxu0 0.0
    %1393 = vmatpush1.msra.mxu0 0.0
    %1394 = vmatprep.subr.mxu0 0.0
    %1395 = vmatpush1.msra.mxu0 0.0
    %1396 = vmatprep.subr.mxu0 0.0
    %1397 = vmatpush1.msra.mxu0 0.0
    %1398 = vmatprep.subr.mxu0 0.0
    %1399 = vmatpush1.msra.mxu0 0.0
    %1400 = vmatprep.subr.mxu0 0.0
    %1401 = vmatpush1.msra.mxu0 0.0
    %1402 = vmatprep.subr.mxu0 0.0
    %1403 = vmatpush1.msra.mxu0 0.0
    %1404 = vmatprep.subr.mxu0 0.0
    %v1405 = vand.u32 %v1069, 4294901760
    %v1406 = vsub.f32 %v1069, %v1405
    %v1407 = vand.u32 %v1406, 4294901760
    %1408 = vmatpush1.msra.mxu0 %v1407
    %1409 = vmatprep.subr.mxu0 0.0
    %1410 = vmatpush2.msra.mxu0 0.0
    %1411 = vmatprep.subr.mxu0 0.0
    %1412 = vmatpush2.msra.mxu0 0.0
    %1413 = vmatprep.subr.mxu0 0.0
    %1414 = vmatpush2.msra.mxu0 0.0
    %1415 = vmatprep.subr.mxu0 0.0
    %1416 = vmatpush2.msra.mxu0 0.0
    %1417 = vmatprep.subr.mxu0 0.0
    %1418 = vmatpush2.msra.mxu0 0.0
    %1419 = vmatprep.subr.mxu0 0.0
    %1420 = vmatpush2.msra.mxu0 0.0
    %1421 = vmatprep.subr.mxu0 0.0
    %1422 = vmatpush2.msra.mxu0 0.0
    %1423 = vmatprep.subr.mxu0 0.0
    %1424 = vmatpush2.msra.mxu0 0.0
    %1425 = vmatprep.subr.mxu0 0.0
    %1426 = vmatpush2.msra.mxu0 0.0
    %1427 = vmatprep.subr.mxu0 0.0
    %1428 = vmatpush2.msra.mxu0 0.0
    %1429 = vmatprep.subr.mxu0 0.0
    %1430 = vmatpush2.msra.mxu0 0.0
    %1431 = vmatprep.subr.mxu0 0.0
    %1432 = vmatpush2.msra.mxu0 0.0
    %1433 = vmatprep.subr.mxu0 0.0
    %1434 = vmatpush2.msra.mxu0 0.0
    %1435 = vmatprep.subr.mxu0 0.0
    %1436 = vmatpush2.msra.mxu0 0.0
    %1437 = vmatprep.subr.mxu0 0.0
    %1438 = vmatpush2.msra.mxu0 0.0
    %1439 = vmatprep.subr.mxu0 0.0
    %1440 = vmatpush2.msra.mxu0 0.0
    %1441 = vmatprep.mubr.f32.mxu0 0.0
    %v1442 = vand.u32 %v1072, 4294901760
    %1443 = vmatmul.mubr.f32.gmra.mxu0 %v1442
    %v1444 = vpop.f32.mrf.mxu0
    %v1445 = vadd.f32 %v1371, %v1444
    %v1446 = vpop.f32.mrf.mxu0
    %1447 = vdwg.mxu0
    %1448 = vmatprep.subr.mxu0 0.0
    %1449 = vmatpush1.msra.mxu0 0.0
    %1450 = vmatprep.subr.mxu0 0.0
    %1451 = vmatpush1.msra.mxu0 0.0
    %1452 = vmatprep.subr.mxu0 0.0
    %1453 = vmatpush1.msra.mxu0 0.0
    %1454 = vmatprep.subr.mxu0 0.0
    %1455 = vmatpush1.msra.mxu0 0.0
    %1456 = vmatprep.subr.mxu0 0.0
    %1457 = vmatpush1.msra.mxu0 0.0
    %1458 = vmatprep.subr.mxu0 0.0
    %1459 = vmatpush1.msra.mxu0 0.0
    %1460 = vmatprep.subr.mxu0 0.0
    %1461 = vmatpush1.msra.mxu0 0.0
    %1462 = vmatprep.subr.mxu0 0.0
    %1463 = vmatpush1.msra.mxu0 0.0
    %1464 = vmatprep.subr.mxu0 0.0
    %1465 = vmatpush1.msra.mxu0 0.0
    %1466 = vmatprep.subr.mxu0 0.0
    %1467 = vmatpush1.msra.mxu0 0.0
    %1468 = vmatprep.subr.mxu0 0.0
    %1469 = vmatpush1.msra.mxu0 0.0
    %1470 = vmatprep.subr.mxu0 0.0
    %1471 = vmatpush1.msra.mxu0 0.0
    %1472 = vmatprep.subr.mxu0 0.0
    %1473 = vmatpush1.msra.mxu0 0.0
    %1474 = vmatprep.subr.mxu0 0.0
    %1475 = vmatpush1.msra.mxu0 0.0
    %1476 = vmatprep.subr.mxu0 0.0
    %1477 = vmatpush1.msra.mxu0 0.0
    %1478 = vmatprep.subr.mxu0 0.0
    %v1479 = vand.u32 %v1069, 4294901760
    %1480 = vmatpush1.msra.mxu0 %v1479
    %1481 = vmatprep.subr.mxu0 0.0
    %1482 = vmatpush2.msra.mxu0 0.0
    %1483 = vmatprep.subr.mxu0 0.0
    %1484 = vmatpush2.msra.mxu0 0.0
    %1485 = vmatprep.subr.mxu0 0.0
    %1486 = vmatpush2.msra.mxu0 0.0
    %1487 = vmatprep.subr.mxu0 0.0
    %1488 = vmatpush2.msra.mxu0 0.0
    %1489 = vmatprep.subr.mxu0 0.0
    %1490 = vmatpush2.msra.mxu0 0.0
    %1491 = vmatprep.subr.mxu0 0.0
    %1492 = vmatpush2.msra.mxu0 0.0
    %1493 = vmatprep.subr.mxu0 0.0
    %1494 = vmatpush2.msra.mxu0 0.0
    %1495 = vmatprep.subr.mxu0 0.0
    %1496 = vmatpush2.msra.mxu0 0.0
    %1497 = vmatprep.subr.mxu0 0.0
    %1498 = vmatpush2.msra.mxu0 0.0
    %1499 = vmatprep.subr.mxu0 0.0
    %1500 = vmatpush2.msra.mxu0 0.0
    %1501 = vmatprep.subr.mxu0 0.0
    %1502 = vmatpush2.msra.mxu0 0.0
    %1503 = vmatprep.subr.mxu0 0.0
    %1504 = vmatpush2.msra.mxu0 0.0
    %1505 = vmatprep.subr.mxu0 0.0
    %1506 = vmatpush2.msra.mxu0 0.0
    %1507 = vmatprep.subr.mxu0 0.0
    %1508 = vmatpush2.msra.mxu0 0.0
    %1509 = vmatprep.subr.mxu0 0.0
    %1510 = vmatpush2.msra.mxu0 0.0
    %1511 = vmatprep.subr.mxu0 0.0
    %1512 = vmatpush2.msra.mxu0 0.0
    %1513 = vmatprep.mubr.f32.mxu0 0.0
    %v1514 = vand.u32 %v1072, 4294901760
    %1515 = vmatmul.mubr.f32.gmra.mxu0 %v1514
    %v1516 = vpop.f32.mrf.mxu0
    %v1517 = vadd.f32 %v1445, %v1516
    %v1518 = vpop.f32.mrf.mxu0
    %1519 = vdwg.mxu0
    %1520 = vst.msk [vmem:[#allocation2] sm:$0xff] %vm605, %v1517
    %1521 = vst.msk [vmem:[#allocation4] sm:$0xff] %vm1056, %v1067
    %1523 = vrot.lane.b32.xlu0 %v599, 112
    %v1524 = vpop.permute.xlu0 %1523
    %v1525 = vsel %vm605, %v599, 0
    %v1527 = vsel %vm605, %v1524, 0
    %1529 = vmatprep.subr.mxu0 0.0
    %1530 = vmatpush1.xpose.msra.mxu0 0.0
    %1531 = vmatprep.subr.mxu0 0.0
    %1532 = vmatpush1.xpose.msra.mxu0 0.0
    %1533 = vmatprep.subr.mxu0 0.0
    %1534 = vmatpush1.xpose.msra.mxu0 0.0
    %1535 = vmatprep.subr.mxu0 0.0
    %1536 = vmatpush1.xpose.msra.mxu0 0.0
    %1537 = vmatprep.subr.mxu0 0.0
    %1538 = vmatpush1.xpose.msra.mxu0 0.0
    %1539 = vmatprep.subr.mxu0 0.0
    %1540 = vmatpush1.xpose.msra.mxu0 0.0
    %1541 = vmatprep.subr.mxu0 0.0
    %1542 = vmatpush1.xpose.msra.mxu0 0.0
    %1543 = vmatprep.subr.mxu0 0.0
    %1544 = vmatpush1.xpose.msra.mxu0 0.0
    %1545 = vmatprep.subr.mxu0 0.0
    %1546 = vmatpush1.xpose.msra.mxu0 0.0
    %1547 = vmatprep.subr.mxu0 0.0
    %1548 = vmatpush1.xpose.msra.mxu0 0.0
    %1549 = vmatprep.subr.mxu0 0.0
    %1550 = vmatpush1.xpose.msra.mxu0 0.0
    %1551 = vmatprep.subr.mxu0 0.0
    %1552 = vmatpush1.xpose.msra.mxu0 0.0
    %1553 = vmatprep.subr.mxu0 0.0
    %1554 = vmatpush1.xpose.msra.mxu0 0.0
    %1555 = vmatprep.subr.mxu0 0.0
    %1556 = vmatpush1.xpose.msra.mxu0 0.0
    %1557 = vmatprep.subr.mxu0 0.0
    %1558 = vmatpush1.xpose.msra.mxu0 0.0
    %1559 = vmatprep.subr.mxu0 0.0
    %v1560 = vand.u32 %v1527, 4294901760
    %1561 = vmatpush1.xpose.msra.mxu0 %v1560
    %1562 = vmatprep.subr.mxu0 0.0
    %1563 = vmatpush2.xpose.msra.mxu0 0.0
    %1564 = vmatprep.subr.mxu0 0.0
    %1565 = vmatpush2.xpose.msra.mxu0 0.0
    %1566 = vmatprep.subr.mxu0 0.0
    %1567 = vmatpush2.xpose.msra.mxu0 0.0
    %1568 = vmatprep.subr.mxu0 0.0
    %1569 = vmatpush2.xpose.msra.mxu0 0.0
    %1570 = vmatprep.subr.mxu0 0.0
    %1571 = vmatpush2.xpose.msra.mxu0 0.0
    %1572 = vmatprep.subr.mxu0 0.0
    %1573 = vmatpush2.xpose.msra.mxu0 0.0
    %1574 = vmatprep.subr.mxu0 0.0
    %1575 = vmatpush2.xpose.msra.mxu0 0.0
    %1576 = vmatprep.subr.mxu0 0.0
    %1577 = vmatpush2.xpose.msra.mxu0 0.0
    %1578 = vmatprep.subr.mxu0 0.0
    %1579 = vmatpush2.xpose.msra.mxu0 0.0
    %1580 = vmatprep.subr.mxu0 0.0
    %1581 = vmatpush2.xpose.msra.mxu0 0.0
    %1582 = vmatprep.subr.mxu0 0.0
    %1583 = vmatpush2.xpose.msra.mxu0 0.0
    %1584 = vmatprep.subr.mxu0 0.0
    %1585 = vmatpush2.xpose.msra.mxu0 0.0
    %1586 = vmatprep.subr.mxu0 0.0
    %1587 = vmatpush2.xpose.msra.mxu0 0.0
    %1588 = vmatprep.subr.mxu0 0.0
    %1589 = vmatpush2.xpose.msra.mxu0 0.0
    %1590 = vmatprep.subr.mxu0 0.0
    %1591 = vmatpush2.xpose.msra.mxu0 0.0
    %1592 = vmatprep.subr.mxu0 0.0
    %1593 = vmatpush2.xpose.msra.mxu0 0.0
    %1594 = vmatprep.mubr.f32.mxu0 0.0
    %v1595 = vand.u32 %v1525, 4294901760
    %v1596 = vsub.f32 %v1525, %v1595
    %v1597 = vand.u32 %v1596, 4294901760
    %v1598 = vsub.f32 %v1596, %v1597
    %v1599 = vand.u32 %v1598, 4294901760
    %1600 = vmatmul.mubr.f32.gmra.mxu0 %v1599
    %v1601 = vpop.f32.mrf.mxu0
    %v1602 = vadd.f32 0.0, %v1601
    %v1603 = vpop.f32.mrf.mxu0
    %1604 = vdwg.mxu0
    %1605 = vmatprep.subr.mxu0 0.0
    %1606 = vmatpush1.xpose.msra.mxu0 0.0
    %1607 = vmatprep.subr.mxu0 0.0
    %1608 = vmatpush1.xpose.msra.mxu0 0.0
    %1609 = vmatprep.subr.mxu0 0.0
    %1610 = vmatpush1.xpose.msra.mxu0 0.0
    %1611 = vmatprep.subr.mxu0 0.0
    %1612 = vmatpush1.xpose.msra.mxu0 0.0
    %1613 = vmatprep.subr.mxu0 0.0
    %1614 = vmatpush1.xpose.msra.mxu0 0.0
    %1615 = vmatprep.subr.mxu0 0.0
    %1616 = vmatpush1.xpose.msra.mxu0 0.0
    %1617 = vmatprep.subr.mxu0 0.0
    %1618 = vmatpush1.xpose.msra.mxu0 0.0
    %1619 = vmatprep.subr.mxu0 0.0
    %1620 = vmatpush1.xpose.msra.mxu0 0.0
    %1621 = vmatprep.subr.mxu0 0.0
    %1622 = vmatpush1.xpose.msra.mxu0 0.0
    %1623 = vmatprep.subr.mxu0 0.0
    %1624 = vmatpush1.xpose.msra.mxu0 0.0
    %1625 = vmatprep.subr.mxu0 0.0
    %1626 = vmatpush1.xpose.msra.mxu0 0.0
    %1627 = vmatprep.subr.mxu0 0.0
    %1628 = vmatpush1.xpose.msra.mxu0 0.0
    %1629 = vmatprep.subr.mxu0 0.0
    %1630 = vmatpush1.xpose.msra.mxu0 0.0
    %1631 = vmatprep.subr.mxu0 0.0
    %1632 = vmatpush1.xpose.msra.mxu0 0.0
    %1633 = vmatprep.subr.mxu0 0.0
    %1634 = vmatpush1.xpose.msra.mxu0 0.0
    %1635 = vmatprep.subr.mxu0 0.0
    %v1636 = vand.u32 %v1527, 4294901760
    %v1637 = vsub.f32 %v1527, %v1636
    %v1638 = vand.u32 %v1637, 4294901760
    %v1639 = vsub.f32 %v1637, %v1638
    %v1640 = vand.u32 %v1639, 4294901760
    %1641 = vmatpush1.xpose.msra.mxu0 %v1640
    %1642 = vmatprep.subr.mxu0 0.0
    %1643 = vmatpush2.xpose.msra.mxu0 0.0
    %1644 = vmatprep.subr.mxu0 0.0
    %1645 = vmatpush2.xpose.msra.mxu0 0.0
    %1646 = vmatprep.subr.mxu0 0.0
    %1647 = vmatpush2.xpose.msra.mxu0 0.0
    %1648 = vmatprep.subr.mxu0 0.0
    %1649 = vmatpush2.xpose.msra.mxu0 0.0
    %1650 = vmatprep.subr.mxu0 0.0
    %1651 = vmatpush2.xpose.msra.mxu0 0.0
    %1652 = vmatprep.subr.mxu0 0.0
    %1653 = vmatpush2.xpose.msra.mxu0 0.0
    %1654 = vmatprep.subr.mxu0 0.0
    %1655 = vmatpush2.xpose.msra.mxu0 0.0
    %1656 = vmatprep.subr.mxu0 0.0
    %1657 = vmatpush2.xpose.msra.mxu0 0.0
    %1658 = vmatprep.subr.mxu0 0.0
    %1659 = vmatpush2.xpose.msra.mxu0 0.0
    %1660 = vmatprep.subr.mxu0 0.0
    %1661 = vmatpush2.xpose.msra.mxu0 0.0
    %1662 = vmatprep.subr.mxu0 0.0
    %1663 = vmatpush2.xpose.msra.mxu0 0.0
    %1664 = vmatprep.subr.mxu0 0.0
    %1665 = vmatpush2.xpose.msra.mxu0 0.0
    %1666 = vmatprep.subr.mxu0 0.0
    %1667 = vmatpush2.xpose.msra.mxu0 0.0
    %1668 = vmatprep.subr.mxu0 0.0
    %1669 = vmatpush2.xpose.msra.mxu0 0.0
    %1670 = vmatprep.subr.mxu0 0.0
    %1671 = vmatpush2.xpose.msra.mxu0 0.0
    %1672 = vmatprep.subr.mxu0 0.0
    %1673 = vmatpush2.xpose.msra.mxu0 0.0
    %1674 = vmatprep.mubr.f32.mxu0 0.0
    %v1675 = vand.u32 %v1525, 4294901760
    %1676 = vmatmul.mubr.f32.gmra.mxu0 %v1675
    %v1677 = vpop.f32.mrf.mxu0
    %v1678 = vadd.f32 %v1602, %v1677
    %v1679 = vpop.f32.mrf.mxu0
    %1680 = vdwg.mxu0
    %1681 = vmatprep.subr.mxu0 0.0
    %1682 = vmatpush1.xpose.msra.mxu0 0.0
    %1683 = vmatprep.subr.mxu0 0.0
    %1684 = vmatpush1.xpose.msra.mxu0 0.0
    %1685 = vmatprep.subr.mxu0 0.0
    %1686 = vmatpush1.xpose.msra.mxu0 0.0
    %1687 = vmatprep.subr.mxu0 0.0
    %1688 = vmatpush1.xpose.msra.mxu0 0.0
    %1689 = vmatprep.subr.mxu0 0.0
    %1690 = vmatpush1.xpose.msra.mxu0 0.0
    %1691 = vmatprep.subr.mxu0 0.0
    %1692 = vmatpush1.xpose.msra.mxu0 0.0
    %1693 = vmatprep.subr.mxu0 0.0
    %1694 = vmatpush1.xpose.msra.mxu0 0.0
    %1695 = vmatprep.subr.mxu0 0.0
    %1696 = vmatpush1.xpose.msra.mxu0 0.0
    %1697 = vmatprep.subr.mxu0 0.0
    %1698 = vmatpush1.xpose.msra.mxu0 0.0
    %1699 = vmatprep.subr.mxu0 0.0
    %1700 = vmatpush1.xpose.msra.mxu0 0.0
    %1701 = vmatprep.subr.mxu0 0.0
    %1702 = vmatpush1.xpose.msra.mxu0 0.0
    %1703 = vmatprep.subr.mxu0 0.0
    %1704 = vmatpush1.xpose.msra.mxu0 0.0
    %1705 = vmatprep.subr.mxu0 0.0
    %1706 = vmatpush1.xpose.msra.mxu0 0.0
    %1707 = vmatprep.subr.mxu0 0.0
    %1708 = vmatpush1.xpose.msra.mxu0 0.0
    %1709 = vmatprep.subr.mxu0 0.0
    %1710 = vmatpush1.xpose.msra.mxu0 0.0
    %1711 = vmatprep.subr.mxu0 0.0
    %v1712 = vand.u32 %v1527, 4294901760
    %v1713 = vsub.f32 %v1527, %v1712
    %1714 = vmatpush1.xpose.msra.mxu0 %v1713
    %1715 = vmatprep.subr.mxu0 0.0
    %1716 = vmatpush2.xpose.msra.mxu0 0.0
    %1717 = vmatprep.subr.mxu0 0.0
    %1718 = vmatpush2.xpose.msra.mxu0 0.0
    %1719 = vmatprep.subr.mxu0 0.0
    %1720 = vmatpush2.xpose.msra.mxu0 0.0
    %1721 = vmatprep.subr.mxu0 0.0
    %1722 = vmatpush2.xpose.msra.mxu0 0.0
    %1723 = vmatprep.subr.mxu0 0.0
    %1724 = vmatpush2.xpose.msra.mxu0 0.0
    %1725 = vmatprep.subr.mxu0 0.0
    %1726 = vmatpush2.xpose.msra.mxu0 0.0
    %1727 = vmatprep.subr.mxu0 0.0
    %1728 = vmatpush2.xpose.msra.mxu0 0.0
    %1729 = vmatprep.subr.mxu0 0.0
    %1730 = vmatpush2.xpose.msra.mxu0 0.0
    %1731 = vmatprep.subr.mxu0 0.0
    %1732 = vmatpush2.xpose.msra.mxu0 0.0
    %1733 = vmatprep.subr.mxu0 0.0
    %1734 = vmatpush2.xpose.msra.mxu0 0.0
    %1735 = vmatprep.subr.mxu0 0.0
    %1736 = vmatpush2.xpose.msra.mxu0 0.0
    %1737 = vmatprep.subr.mxu0 0.0
    %1738 = vmatpush2.xpose.msra.mxu0 0.0
    %1739 = vmatprep.subr.mxu0 0.0
    %1740 = vmatpush2.xpose.msra.mxu0 0.0
    %1741 = vmatprep.subr.mxu0 0.0
    %1742 = vmatpush2.xpose.msra.mxu0 0.0
    %1743 = vmatprep.subr.mxu0 0.0
    %1744 = vmatpush2.xpose.msra.mxu0 0.0
    %1745 = vmatprep.subr.mxu0 0.0
    %1746 = vmatpush2.xpose.msra.mxu0 0.0
    %1747 = vmatprep.mubr.f32.mxu0 0.0
    %v1748 = vand.u32 %v1525, 4294901760
    %v1749 = vsub.f32 %v1525, %v1748
    %1750 = vmatmul.mubr.f32.gmra.mxu0 %v1749
    %v1751 = vpop.f32.mrf.mxu0
    %v1752 = vadd.f32 %v1678, %v1751
    %v1753 = vpop.f32.mrf.mxu0
    %1754 = vdwg.mxu0
    %1755 = vmatprep.subr.mxu0 0.0
    %1756 = vmatpush1.xpose.msra.mxu0 0.0
    %1757 = vmatprep.subr.mxu0 0.0
    %1758 = vmatpush1.xpose.msra.mxu0 0.0
    %1759 = vmatprep.subr.mxu0 0.0
    %1760 = vmatpush1.xpose.msra.mxu0 0.0
    %1761 = vmatprep.subr.mxu0 0.0
    %1762 = vmatpush1.xpose.msra.mxu0 0.0
    %1763 = vmatprep.subr.mxu0 0.0
    %1764 = vmatpush1.xpose.msra.mxu0 0.0
    %1765 = vmatprep.subr.mxu0 0.0
    %1766 = vmatpush1.xpose.msra.mxu0 0.0
    %1767 = vmatprep.subr.mxu0 0.0
    %1768 = vmatpush1.xpose.msra.mxu0 0.0
    %1769 = vmatprep.subr.mxu0 0.0
    %1770 = vmatpush1.xpose.msra.mxu0 0.0
    %1771 = vmatprep.subr.mxu0 0.0
    %1772 = vmatpush1.xpose.msra.mxu0 0.0
    %1773 = vmatprep.subr.mxu0 0.0
    %1774 = vmatpush1.xpose.msra.mxu0 0.0
    %1775 = vmatprep.subr.mxu0 0.0
    %1776 = vmatpush1.xpose.msra.mxu0 0.0
    %1777 = vmatprep.subr.mxu0 0.0
    %1778 = vmatpush1.xpose.msra.mxu0 0.0
    %1779 = vmatprep.subr.mxu0 0.0
    %1780 = vmatpush1.xpose.msra.mxu0 0.0
    %1781 = vmatprep.subr.mxu0 0.0
    %1782 = vmatpush1.xpose.msra.mxu0 0.0
    %1783 = vmatprep.subr.mxu0 0.0
    %1784 = vmatpush1.xpose.msra.mxu0 0.0
    %1785 = vmatprep.subr.mxu0 0.0
    %v1786 = vand.u32 %v1527, 4294901760
    %1787 = vmatpush1.xpose.msra.mxu0 %v1786
    %1788 = vmatprep.subr.mxu0 0.0
    %1789 = vmatpush2.xpose.msra.mxu0 0.0
    %1790 = vmatprep.subr.mxu0 0.0
    %1791 = vmatpush2.xpose.msra.mxu0 0.0
    %1792 = vmatprep.subr.mxu0 0.0
    %1793 = vmatpush2.xpose.msra.mxu0 0.0
    %1794 = vmatprep.subr.mxu0 0.0
    %1795 = vmatpush2.xpose.msra.mxu0 0.0
    %1796 = vmatprep.subr.mxu0 0.0
    %1797 = vmatpush2.xpose.msra.mxu0 0.0
    %1798 = vmatprep.subr.mxu0 0.0
    %1799 = vmatpush2.xpose.msra.mxu0 0.0
    %1800 = vmatprep.subr.mxu0 0.0
    %1801 = vmatpush2.xpose.msra.mxu0 0.0
    %1802 = vmatprep.subr.mxu0 0.0
    %1803 = vmatpush2.xpose.msra.mxu0 0.0
    %1804 = vmatprep.subr.mxu0 0.0
    %1805 = vmatpush2.xpose.msra.mxu0 0.0
    %1806 = vmatprep.subr.mxu0 0.0
    %1807 = vmatpush2.xpose.msra.mxu0 0.0
    %1808 = vmatprep.subr.mxu0 0.0
    %1809 = vmatpush2.xpose.msra.mxu0 0.0
    %1810 = vmatprep.subr.mxu0 0.0
    %1811 = vmatpush2.xpose.msra.mxu0 0.0
    %1812 = vmatprep.subr.mxu0 0.0
    %1813 = vmatpush2.xpose.msra.mxu0 0.0
    %1814 = vmatprep.subr.mxu0 0.0
    %1815 = vmatpush2.xpose.msra.mxu0 0.0
    %1816 = vmatprep.subr.mxu0 0.0
    %1817 = vmatpush2.xpose.msra.mxu0 0.0
    %1818 = vmatprep.subr.mxu0 0.0
    %1819 = vmatpush2.xpose.msra.mxu0 0.0
    %1820 = vmatprep.mubr.f32.mxu0 0.0
    %v1821 = vand.u32 %v1525, 4294901760
    %v1822 = vsub.f32 %v1525, %v1821
    %v1823 = vand.u32 %v1822, 4294901760
    %1824 = vmatmul.mubr.f32.gmra.mxu0 %v1823
    %v1825 = vpop.f32.mrf.mxu0
    %v1826 = vadd.f32 %v1752, %v1825
    %v1827 = vpop.f32.mrf.mxu0
    %1828 = vdwg.mxu0
    %1829 = vmatprep.subr.mxu0 0.0
    %1830 = vmatpush1.xpose.msra.mxu0 0.0
    %1831 = vmatprep.subr.mxu0 0.0
    %1832 = vmatpush1.xpose.msra.mxu0 0.0
    %1833 = vmatprep.subr.mxu0 0.0
    %1834 = vmatpush1.xpose.msra.mxu0 0.0
    %1835 = vmatprep.subr.mxu0 0.0
    %1836 = vmatpush1.xpose.msra.mxu0 0.0
    %1837 = vmatprep.subr.mxu0 0.0
    %1838 = vmatpush1.xpose.msra.mxu0 0.0
    %1839 = vmatprep.subr.mxu0 0.0
    %1840 = vmatpush1.xpose.msra.mxu0 0.0
    %1841 = vmatprep.subr.mxu0 0.0
    %1842 = vmatpush1.xpose.msra.mxu0 0.0
    %1843 = vmatprep.subr.mxu0 0.0
    %1844 = vmatpush1.xpose.msra.mxu0 0.0
    %1845 = vmatprep.subr.mxu0 0.0
    %1846 = vmatpush1.xpose.msra.mxu0 0.0
    %1847 = vmatprep.subr.mxu0 0.0
    %1848 = vmatpush1.xpose.msra.mxu0 0.0
    %1849 = vmatprep.subr.mxu0 0.0
    %1850 = vmatpush1.xpose.msra.mxu0 0.0
    %1851 = vmatprep.subr.mxu0 0.0
    %1852 = vmatpush1.xpose.msra.mxu0 0.0
    %1853 = vmatprep.subr.mxu0 0.0
    %1854 = vmatpush1.xpose.msra.mxu0 0.0
    %1855 = vmatprep.subr.mxu0 0.0
    %1856 = vmatpush1.xpose.msra.mxu0 0.0
    %1857 = vmatprep.subr.mxu0 0.0
    %1858 = vmatpush1.xpose.msra.mxu0 0.0
    %1859 = vmatprep.subr.mxu0 0.0
    %v1860 = vand.u32 %v1527, 4294901760
    %v1861 = vsub.f32 %v1527, %v1860
    %v1862 = vand.u32 %v1861, 4294901760
    %1863 = vmatpush1.xpose.msra.mxu0 %v1862
    %1864 = vmatprep.subr.mxu0 0.0
    %1865 = vmatpush2.xpose.msra.mxu0 0.0
    %1866 = vmatprep.subr.mxu0 0.0
    %1867 = vmatpush2.xpose.msra.mxu0 0.0
    %1868 = vmatprep.subr.mxu0 0.0
    %1869 = vmatpush2.xpose.msra.mxu0 0.0
    %1870 = vmatprep.subr.mxu0 0.0
    %1871 = vmatpush2.xpose.msra.mxu0 0.0
    %1872 = vmatprep.subr.mxu0 0.0
    %1873 = vmatpush2.xpose.msra.mxu0 0.0
    %1874 = vmatprep.subr.mxu0 0.0
    %1875 = vmatpush2.xpose.msra.mxu0 0.0
    %1876 = vmatprep.subr.mxu0 0.0
    %1877 = vmatpush2.xpose.msra.mxu0 0.0
    %1878 = vmatprep.subr.mxu0 0.0
    %1879 = vmatpush2.xpose.msra.mxu0 0.0
    %1880 = vmatprep.subr.mxu0 0.0
    %1881 = vmatpush2.xpose.msra.mxu0 0.0
    %1882 = vmatprep.subr.mxu0 0.0
    %1883 = vmatpush2.xpose.msra.mxu0 0.0
    %1884 = vmatprep.subr.mxu0 0.0
    %1885 = vmatpush2.xpose.msra.mxu0 0.0
    %1886 = vmatprep.subr.mxu0 0.0
    %1887 = vmatpush2.xpose.msra.mxu0 0.0
    %1888 = vmatprep.subr.mxu0 0.0
    %1889 = vmatpush2.xpose.msra.mxu0 0.0
    %1890 = vmatprep.subr.mxu0 0.0
    %1891 = vmatpush2.xpose.msra.mxu0 0.0
    %1892 = vmatprep.subr.mxu0 0.0
    %1893 = vmatpush2.xpose.msra.mxu0 0.0
    %1894 = vmatprep.subr.mxu0 0.0
    %1895 = vmatpush2.xpose.msra.mxu0 0.0
    %1896 = vmatprep.mubr.f32.mxu0 0.0
    %v1897 = vand.u32 %v1525, 4294901760
    %1898 = vmatmul.mubr.f32.gmra.mxu0 %v1897
    %v1899 = vpop.f32.mrf.mxu0
    %v1900 = vadd.f32 %v1826, %v1899
    %v1901 = vpop.f32.mrf.mxu0
    %1902 = vdwg.mxu0
    %1903 = vmatprep.subr.mxu0 0.0
    %1904 = vmatpush1.xpose.msra.mxu0 0.0
    %1905 = vmatprep.subr.mxu0 0.0
    %1906 = vmatpush1.xpose.msra.mxu0 0.0
    %1907 = vmatprep.subr.mxu0 0.0
    %1908 = vmatpush1.xpose.msra.mxu0 0.0
    %1909 = vmatprep.subr.mxu0 0.0
    %1910 = vmatpush1.xpose.msra.mxu0 0.0
    %1911 = vmatprep.subr.mxu0 0.0
    %1912 = vmatpush1.xpose.msra.mxu0 0.0
    %1913 = vmatprep.subr.mxu0 0.0
    %1914 = vmatpush1.xpose.msra.mxu0 0.0
    %1915 = vmatprep.subr.mxu0 0.0
    %1916 = vmatpush1.xpose.msra.mxu0 0.0
    %1917 = vmatprep.subr.mxu0 0.0
    %1918 = vmatpush1.xpose.msra.mxu0 0.0
    %1919 = vmatprep.subr.mxu0 0.0
    %1920 = vmatpush1.xpose.msra.mxu0 0.0
    %1921 = vmatprep.subr.mxu0 0.0
    %1922 = vmatpush1.xpose.msra.mxu0 0.0
    %1923 = vmatprep.subr.mxu0 0.0
    %1924 = vmatpush1.xpose.msra.mxu0 0.0
    %1925 = vmatprep.subr.mxu0 0.0
    %1926 = vmatpush1.xpose.msra.mxu0 0.0
    %1927 = vmatprep.subr.mxu0 0.0
    %1928 = vmatpush1.xpose.msra.mxu0 0.0
    %1929 = vmatprep.subr.mxu0 0.0
    %1930 = vmatpush1.xpose.msra.mxu0 0.0
    %1931 = vmatprep.subr.mxu0 0.0
    %1932 = vmatpush1.xpose.msra.mxu0 0.0
    %1933 = vmatprep.subr.mxu0 0.0
    %v1934 = vand.u32 %v1527, 4294901760
    %1935 = vmatpush1.xpose.msra.mxu0 %v1934
    %1936 = vmatprep.subr.mxu0 0.0
    %1937 = vmatpush2.xpose.msra.mxu0 0.0
    %1938 = vmatprep.subr.mxu0 0.0
    %1939 = vmatpush2.xpose.msra.mxu0 0.0
    %1940 = vmatprep.subr.mxu0 0.0
    %1941 = vmatpush2.xpose.msra.mxu0 0.0
    %1942 = vmatprep.subr.mxu0 0.0
    %1943 = vmatpush2.xpose.msra.mxu0 0.0
    %1944 = vmatprep.subr.mxu0 0.0
    %1945 = vmatpush2.xpose.msra.mxu0 0.0
    %1946 = vmatprep.subr.mxu0 0.0
    %1947 = vmatpush2.xpose.msra.mxu0 0.0
    %1948 = vmatprep.subr.mxu0 0.0
    %1949 = vmatpush2.xpose.msra.mxu0 0.0
    %1950 = vmatprep.subr.mxu0 0.0
    %1951 = vmatpush2.xpose.msra.mxu0 0.0
    %1952 = vmatprep.subr.mxu0 0.0
    %1953 = vmatpush2.xpose.msra.mxu0 0.0
    %1954 = vmatprep.subr.mxu0 0.0
    %1955 = vmatpush2.xpose.msra.mxu0 0.0
    %1956 = vmatprep.subr.mxu0 0.0
    %1957 = vmatpush2.xpose.msra.mxu0 0.0
    %1958 = vmatprep.subr.mxu0 0.0
    %1959 = vmatpush2.xpose.msra.mxu0 0.0
    %1960 = vmatprep.subr.mxu0 0.0
    %1961 = vmatpush2.xpose.msra.mxu0 0.0
    %1962 = vmatprep.subr.mxu0 0.0
    %1963 = vmatpush2.xpose.msra.mxu0 0.0
    %1964 = vmatprep.subr.mxu0 0.0
    %1965 = vmatpush2.xpose.msra.mxu0 0.0
    %1966 = vmatprep.subr.mxu0 0.0
    %1967 = vmatpush2.xpose.msra.mxu0 0.0
    %1968 = vmatprep.mubr.f32.mxu0 0.0
    %v1969 = vand.u32 %v1525, 4294901760
    %1970 = vmatmul.mubr.f32.gmra.mxu0 %v1969
    %v1971 = vpop.f32.mrf.mxu0
    %v1972 = vadd.f32 %v1900, %v1971
    %v1973 = vpop.f32.mrf.mxu0
    %1974 = vdwg.mxu0
    %v1975 = vsel %vm1056, %v1972, -inf
    %1976 = vmax.xlane.f32.xlu0 %v1975
    %v1977 = vpop.xlane.xlu0 %1976
    %v1978 = vsub.f32 %v1972, %v1977
    %v1979 = vmul.f32 %v1978, 1.442695
    %v1980 = vpow.pop %v1979
    %v1981 = vsel %vm1056, %v1980, 0.0
    %1982 = vadd.xlane.f32.xlu0 %v1981
    %v1983 = vpop.xlane.xlu0 %1982
    %v1984 = vrcp.pop %v1983
    %v1985 = vmul.f32 %v1980, %v1984
    %1986 = vrot.lane.b32.xlu0 %v599, 96
    %v1987 = vpop.permute.xlu0 %1986
    %v1990 = vsel %vm1056, %v1985, 0
    %1992 = vmatprep.subr.mxu0 0.0
    %1993 = vmatpush1.msra.mxu0 0.0
    %1994 = vmatprep.subr.mxu0 0.0
    %1995 = vmatpush1.msra.mxu0 0.0
    %1996 = vmatprep.subr.mxu0 0.0
    %1997 = vmatpush1.msra.mxu0 0.0
    %1998 = vmatprep.subr.mxu0 0.0
    %1999 = vmatpush1.msra.mxu0 0.0
    %2000 = vmatprep.subr.mxu0 0.0
    %2001 = vmatpush1.msra.mxu0 0.0
    %2002 = vmatprep.subr.mxu0 0.0
    %2003 = vmatpush1.msra.mxu0 0.0
    %2004 = vmatprep.subr.mxu0 0.0
    %2005 = vmatpush1.msra.mxu0 0.0
    %2006 = vmatprep.subr.mxu0 0.0
    %2007 = vmatpush1.msra.mxu0 0.0
    %2008 = vmatprep.subr.mxu0 0.0
    %2009 = vmatpush1.msra.mxu0 0.0
    %2010 = vmatprep.subr.mxu0 0.0
    %2011 = vmatpush1.msra.mxu0 0.0
    %2012 = vmatprep.subr.mxu0 0.0
    %2013 = vmatpush1.msra.mxu0 0.0
    %2014 = vmatprep.subr.mxu0 0.0
    %2015 = vmatpush1.msra.mxu0 0.0
    %2016 = vmatprep.subr.mxu0 0.0
    %2017 = vmatpush1.msra.mxu0 0.0
    %2018 = vmatprep.subr.mxu0 0.0
    %2019 = vmatpush1.msra.mxu0 0.0
    %2020 = vmatprep.subr.mxu0 0.0
    %2021 = vmatpush1.msra.mxu0 0.0
    %2022 = vmatprep.subr.mxu0 0.0
    %v2023 = vand.u32 %v1987, 4294901760
    %2024 = vmatpush1.msra.mxu0 %v2023
    %2025 = vmatprep.subr.mxu0 0.0
    %2026 = vmatpush2.msra.mxu0 0.0
    %2027 = vmatprep.subr.mxu0 0.0
    %2028 = vmatpush2.msra.mxu0 0.0
    %2029 = vmatprep.subr.mxu0 0.0
    %2030 = vmatpush2.msra.mxu0 0.0
    %2031 = vmatprep.subr.mxu0 0.0
    %2032 = vmatpush2.msra.mxu0 0.0
    %2033 = vmatprep.subr.mxu0 0.0
    %2034 = vmatpush2.msra.mxu0 0.0
    %2035 = vmatprep.subr.mxu0 0.0
    %2036 = vmatpush2.msra.mxu0 0.0
    %2037 = vmatprep.subr.mxu0 0.0
    %2038 = vmatpush2.msra.mxu0 0.0
    %2039 = vmatprep.subr.mxu0 0.0
    %2040 = vmatpush2.msra.mxu0 0.0
    %2041 = vmatprep.subr.mxu0 0.0
    %2042 = vmatpush2.msra.mxu0 0.0
    %2043 = vmatprep.subr.mxu0 0.0
    %2044 = vmatpush2.msra.mxu0 0.0
    %2045 = vmatprep.subr.mxu0 0.0
    %2046 = vmatpush2.msra.mxu0 0.0
    %2047 = vmatprep.subr.mxu0 0.0
    %2048 = vmatpush2.msra.mxu0 0.0
    %2049 = vmatprep.subr.mxu0 0.0
    %2050 = vmatpush2.msra.mxu0 0.0
    %2051 = vmatprep.subr.mxu0 0.0
    %2052 = vmatpush2.msra.mxu0 0.0
    %2053 = vmatprep.subr.mxu0 0.0
    %2054 = vmatpush2.msra.mxu0 0.0
    %2055 = vmatprep.subr.mxu0 0.0
    %2056 = vmatpush2.msra.mxu0 0.0
    %2057 = vmatprep.mubr.f32.mxu0 0.0
    %v2058 = vand.u32 %v1990, 4294901760
    %v2059 = vsub.f32 %v1990, %v2058
    %v2060 = vand.u32 %v2059, 4294901760
    %v2061 = vsub.f32 %v2059, %v2060
    %v2062 = vand.u32 %v2061, 4294901760
    %2063 = vmatmul.mubr.f32.gmra.mxu0 %v2062
    %v2064 = vpop.f32.mrf.mxu0
    %v2065 = vadd.f32 0.0, %v2064
    %v2066 = vpop.f32.mrf.mxu0
    %2067 = vdwg.mxu0
    %2068 = vmatprep.subr.mxu0 0.0
    %2069 = vmatpush1.msra.mxu0 0.0
    %2070 = vmatprep.subr.mxu0 0.0
    %2071 = vmatpush1.msra.mxu0 0.0
    %2072 = vmatprep.subr.mxu0 0.0
    %2073 = vmatpush1.msra.mxu0 0.0
    %2074 = vmatprep.subr.mxu0 0.0
    %2075 = vmatpush1.msra.mxu0 0.0
    %2076 = vmatprep.subr.mxu0 0.0
    %2077 = vmatpush1.msra.mxu0 0.0
    %2078 = vmatprep.subr.mxu0 0.0
    %2079 = vmatpush1.msra.mxu0 0.0
    %2080 = vmatprep.subr.mxu0 0.0
    %2081 = vmatpush1.msra.mxu0 0.0
    %2082 = vmatprep.subr.mxu0 0.0
    %2083 = vmatpush1.msra.mxu0 0.0
    %2084 = vmatprep.subr.mxu0 0.0
    %2085 = vmatpush1.msra.mxu0 0.0
    %2086 = vmatprep.subr.mxu0 0.0
    %2087 = vmatpush1.msra.mxu0 0.0
    %2088 = vmatprep.subr.mxu0 0.0
    %2089 = vmatpush1.msra.mxu0 0.0
    %2090 = vmatprep.subr.mxu0 0.0
    %2091 = vmatpush1.msra.mxu0 0.0
    %2092 = vmatprep.subr.mxu0 0.0
    %2093 = vmatpush1.msra.mxu0 0.0
    %2094 = vmatprep.subr.mxu0 0.0
    %2095 = vmatpush1.msra.mxu0 0.0
    %2096 = vmatprep.subr.mxu0 0.0
    %2097 = vmatpush1.msra.mxu0 0.0
    %2098 = vmatprep.subr.mxu0 0.0
    %v2099 = vand.u32 %v1987, 4294901760
    %v2100 = vsub.f32 %v1987, %v2099
    %v2101 = vand.u32 %v2100, 4294901760
    %v2102 = vsub.f32 %v2100, %v2101
    %v2103 = vand.u32 %v2102, 4294901760
    %2104 = vmatpush1.msra.mxu0 %v2103
    %2105 = vmatprep.subr.mxu0 0.0
    %2106 = vmatpush2.msra.mxu0 0.0
    %2107 = vmatprep.subr.mxu0 0.0
    %2108 = vmatpush2.msra.mxu0 0.0
    %2109 = vmatprep.subr.mxu0 0.0
    %2110 = vmatpush2.msra.mxu0 0.0
    %2111 = vmatprep.subr.mxu0 0.0
    %2112 = vmatpush2.msra.mxu0 0.0
    %2113 = vmatprep.subr.mxu0 0.0
    %2114 = vmatpush2.msra.mxu0 0.0
    %2115 = vmatprep.subr.mxu0 0.0
    %2116 = vmatpush2.msra.mxu0 0.0
    %2117 = vmatprep.subr.mxu0 0.0
    %2118 = vmatpush2.msra.mxu0 0.0
    %2119 = vmatprep.subr.mxu0 0.0
    %2120 = vmatpush2.msra.mxu0 0.0
    %2121 = vmatprep.subr.mxu0 0.0
    %2122 = vmatpush2.msra.mxu0 0.0
    %2123 = vmatprep.subr.mxu0 0.0
    %2124 = vmatpush2.msra.mxu0 0.0
    %2125 = vmatprep.subr.mxu0 0.0
    %2126 = vmatpush2.msra.mxu0 0.0
    %2127 = vmatprep.subr.mxu0 0.0
    %2128 = vmatpush2.msra.mxu0 0.0
    %2129 = vmatprep.subr.mxu0 0.0
    %2130 = vmatpush2.msra.mxu0 0.0
    %2131 = vmatprep.subr.mxu0 0.0
    %2132 = vmatpush2.msra.mxu0 0.0
    %2133 = vmatprep.subr.mxu0 0.0
    %2134 = vmatpush2.msra.mxu0 0.0
    %2135 = vmatprep.subr.mxu0 0.0
    %2136 = vmatpush2.msra.mxu0 0.0
    %2137 = vmatprep.mubr.f32.mxu0 0.0
    %v2138 = vand.u32 %v1990, 4294901760
    %2139 = vmatmul.mubr.f32.gmra.mxu0 %v2138
    %v2140 = vpop.f32.mrf.mxu0
    %v2141 = vadd.f32 %v2065, %v2140
    %v2142 = vpop.f32.mrf.mxu0
    %2143 = vdwg.mxu0
    %2144 = vmatprep.subr.mxu0 0.0
    %2145 = vmatpush1.msra.mxu0 0.0
    %2146 = vmatprep.subr.mxu0 0.0
    %2147 = vmatpush1.msra.mxu0 0.0
    %2148 = vmatprep.subr.mxu0 0.0
    %2149 = vmatpush1.msra.mxu0 0.0
    %2150 = vmatprep.subr.mxu0 0.0
    %2151 = vmatpush1.msra.mxu0 0.0
    %2152 = vmatprep.subr.mxu0 0.0
    %2153 = vmatpush1.msra.mxu0 0.0
    %2154 = vmatprep.subr.mxu0 0.0
    %2155 = vmatpush1.msra.mxu0 0.0
    %2156 = vmatprep.subr.mxu0 0.0
    %2157 = vmatpush1.msra.mxu0 0.0
    %2158 = vmatprep.subr.mxu0 0.0
    %2159 = vmatpush1.msra.mxu0 0.0
    %2160 = vmatprep.subr.mxu0 0.0
    %2161 = vmatpush1.msra.mxu0 0.0
    %2162 = vmatprep.subr.mxu0 0.0
    %2163 = vmatpush1.msra.mxu0 0.0
    %2164 = vmatprep.subr.mxu0 0.0
    %2165 = vmatpush1.msra.mxu0 0.0
    %2166 = vmatprep.subr.mxu0 0.0
    %2167 = vmatpush1.msra.mxu0 0.0
    %2168 = vmatprep.subr.mxu0 0.0
    %2169 = vmatpush1.msra.mxu0 0.0
    %2170 = vmatprep.subr.mxu0 0.0
    %2171 = vmatpush1.msra.mxu0 0.0
    %2172 = vmatprep.subr.mxu0 0.0
    %2173 = vmatpush1.msra.mxu0 0.0
    %2174 = vmatprep.subr.mxu0 0.0
    %v2175 = vand.u32 %v1987, 4294901760
    %v2176 = vsub.f32 %v1987, %v2175
    %2177 = vmatpush1.msra.mxu0 %v2176
    %2178 = vmatprep.subr.mxu0 0.0
    %2179 = vmatpush2.msra.mxu0 0.0
    %2180 = vmatprep.subr.mxu0 0.0
    %2181 = vmatpush2.msra.mxu0 0.0
    %2182 = vmatprep.subr.mxu0 0.0
    %2183 = vmatpush2.msra.mxu0 0.0
    %2184 = vmatprep.subr.mxu0 0.0
    %2185 = vmatpush2.msra.mxu0 0.0
    %2186 = vmatprep.subr.mxu0 0.0
    %2187 = vmatpush2.msra.mxu0 0.0
    %2188 = vmatprep.subr.mxu0 0.0
    %2189 = vmatpush2.msra.mxu0 0.0
    %2190 = vmatprep.subr.mxu0 0.0
    %2191 = vmatpush2.msra.mxu0 0.0
    %2192 = vmatprep.subr.mxu0 0.0
    %2193 = vmatpush2.msra.mxu0 0.0
    %2194 = vmatprep.subr.mxu0 0.0
    %2195 = vmatpush2.msra.mxu0 0.0
    %2196 = vmatprep.subr.mxu0 0.0
    %2197 = vmatpush2.msra.mxu0 0.0
    %2198 = vmatprep.subr.mxu0 0.0
    %2199 = vmatpush2.msra.mxu0 0.0
    %2200 = vmatprep.subr.mxu0 0.0
    %2201 = vmatpush2.msra.mxu0 0.0
    %2202 = vmatprep.subr.mxu0 0.0
    %2203 = vmatpush2.msra.mxu0 0.0
    %2204 = vmatprep.subr.mxu0 0.0
    %2205 = vmatpush2.msra.mxu0 0.0
    %2206 = vmatprep.subr.mxu0 0.0
    %2207 = vmatpush2.msra.mxu0 0.0
    %2208 = vmatprep.subr.mxu0 0.0
    %2209 = vmatpush2.msra.mxu0 0.0
    %2210 = vmatprep.mubr.f32.mxu0 0.0
    %v2211 = vand.u32 %v1990, 4294901760
    %v2212 = vsub.f32 %v1990, %v2211
    %2213 = vmatmul.mubr.f32.gmra.mxu0 %v2212
    %v2214 = vpop.f32.mrf.mxu0
    %v2215 = vadd.f32 %v2141, %v2214
    %v2216 = vpop.f32.mrf.mxu0
    %2217 = vdwg.mxu0
    %2218 = vmatprep.subr.mxu0 0.0
    %2219 = vmatpush1.msra.mxu0 0.0
    %2220 = vmatprep.subr.mxu0 0.0
    %2221 = vmatpush1.msra.mxu0 0.0
    %2222 = vmatprep.subr.mxu0 0.0
    %2223 = vmatpush1.msra.mxu0 0.0
    %2224 = vmatprep.subr.mxu0 0.0
    %2225 = vmatpush1.msra.mxu0 0.0
    %2226 = vmatprep.subr.mxu0 0.0
    %2227 = vmatpush1.msra.mxu0 0.0
    %2228 = vmatprep.subr.mxu0 0.0
    %2229 = vmatpush1.msra.mxu0 0.0
    %2230 = vmatprep.subr.mxu0 0.0
    %2231 = vmatpush1.msra.mxu0 0.0
    %2232 = vmatprep.subr.mxu0 0.0
    %2233 = vmatpush1.msra.mxu0 0.0
    %2234 = vmatprep.subr.mxu0 0.0
    %2235 = vmatpush1.msra.mxu0 0.0
    %2236 = vmatprep.subr.mxu0 0.0
    %2237 = vmatpush1.msra.mxu0 0.0
    %2238 = vmatprep.subr.mxu0 0.0
    %2239 = vmatpush1.msra.mxu0 0.0
    %2240 = vmatprep.subr.mxu0 0.0
    %2241 = vmatpush1.msra.mxu0 0.0
    %2242 = vmatprep.subr.mxu0 0.0
    %2243 = vmatpush1.msra.mxu0 0.0
    %2244 = vmatprep.subr.mxu0 0.0
    %2245 = vmatpush1.msra.mxu0 0.0
    %2246 = vmatprep.subr.mxu0 0.0
    %2247 = vmatpush1.msra.mxu0 0.0
    %2248 = vmatprep.subr.mxu0 0.0
    %v2249 = vand.u32 %v1987, 4294901760
    %2250 = vmatpush1.msra.mxu0 %v2249
    %2251 = vmatprep.subr.mxu0 0.0
    %2252 = vmatpush2.msra.mxu0 0.0
    %2253 = vmatprep.subr.mxu0 0.0
    %2254 = vmatpush2.msra.mxu0 0.0
    %2255 = vmatprep.subr.mxu0 0.0
    %2256 = vmatpush2.msra.mxu0 0.0
    %2257 = vmatprep.subr.mxu0 0.0
    %2258 = vmatpush2.msra.mxu0 0.0
    %2259 = vmatprep.subr.mxu0 0.0
    %2260 = vmatpush2.msra.mxu0 0.0
    %2261 = vmatprep.subr.mxu0 0.0
    %2262 = vmatpush2.msra.mxu0 0.0
    %2263 = vmatprep.subr.mxu0 0.0
    %2264 = vmatpush2.msra.mxu0 0.0
    %2265 = vmatprep.subr.mxu0 0.0
    %2266 = vmatpush2.msra.mxu0 0.0
    %2267 = vmatprep.subr.mxu0 0.0
    %2268 = vmatpush2.msra.mxu0 0.0
    %2269 = vmatprep.subr.mxu0 0.0
    %2270 = vmatpush2.msra.mxu0 0.0
    %2271 = vmatprep.subr.mxu0 0.0
    %2272 = vmatpush2.msra.mxu0 0.0
    %2273 = vmatprep.subr.mxu0 0.0
    %2274 = vmatpush2.msra.mxu0 0.0
    %2275 = vmatprep.subr.mxu0 0.0
    %2276 = vmatpush2.msra.mxu0 0.0
    %2277 = vmatprep.subr.mxu0 0.0
    %2278 = vmatpush2.msra.mxu0 0.0
    %2279 = vmatprep.subr.mxu0 0.0
    %2280 = vmatpush2.msra.mxu0 0.0
    %2281 = vmatprep.subr.mxu0 0.0
    %2282 = vmatpush2.msra.mxu0 0.0
    %2283 = vmatprep.mubr.f32.mxu0 0.0
    %v2284 = vand.u32 %v1990, 4294901760
    %v2285 = vsub.f32 %v1990, %v2284
    %v2286 = vand.u32 %v2285, 4294901760
    %2287 = vmatmul.mubr.f32.gmra.mxu0 %v2286
    %v2288 = vpop.f32.mrf.mxu0
    %v2289 = vadd.f32 %v2215, %v2288
    %v2290 = vpop.f32.mrf.mxu0
    %2291 = vdwg.mxu0
    %2292 = vmatprep.subr.mxu0 0.0
    %2293 = vmatpush1.msra.mxu0 0.0
    %2294 = vmatprep.subr.mxu0 0.0
    %2295 = vmatpush1.msra.mxu0 0.0
    %2296 = vmatprep.subr.mxu0 0.0
    %2297 = vmatpush1.msra.mxu0 0.0
    %2298 = vmatprep.subr.mxu0 0.0
    %2299 = vmatpush1.msra.mxu0 0.0
    %2300 = vmatprep.subr.mxu0 0.0
    %2301 = vmatpush1.msra.mxu0 0.0
    %2302 = vmatprep.subr.mxu0 0.0
    %2303 = vmatpush1.msra.mxu0 0.0
    %2304 = vmatprep.subr.mxu0 0.0
    %2305 = vmatpush1.msra.mxu0 0.0
    %2306 = vmatprep.subr.mxu0 0.0
    %2307 = vmatpush1.msra.mxu0 0.0
    %2308 = vmatprep.subr.mxu0 0.0
    %2309 = vmatpush1.msra.mxu0 0.0
    %2310 = vmatprep.subr.mxu0 0.0
    %2311 = vmatpush1.msra.mxu0 0.0
    %2312 = vmatprep.subr.mxu0 0.0
    %2313 = vmatpush1.msra.mxu0 0.0
    %2314 = vmatprep.subr.mxu0 0.0
    %2315 = vmatpush1.msra.mxu0 0.0
    %2316 = vmatprep.subr.mxu0 0.0
    %2317 = vmatpush1.msra.mxu0 0.0
    %2318 = vmatprep.subr.mxu0 0.0
    %2319 = vmatpush1.msra.mxu0 0.0
    %2320 = vmatprep.subr.mxu0 0.0
    %2321 = vmatpush1.msra.mxu0 0.0
    %2322 = vmatprep.subr.mxu0 0.0
    %v2323 = vand.u32 %v1987, 4294901760
    %v2324 = vsub.f32 %v1987, %v2323
    %v2325 = vand.u32 %v2324, 4294901760
    %2326 = vmatpush1.msra.mxu0 %v2325
    %2327 = vmatprep.subr.mxu0 0.0
    %2328 = vmatpush2.msra.mxu0 0.0
    %2329 = vmatprep.subr.mxu0 0.0
    %2330 = vmatpush2.msra.mxu0 0.0
    %2331 = vmatprep.subr.mxu0 0.0
    %2332 = vmatpush2.msra.mxu0 0.0
    %2333 = vmatprep.subr.mxu0 0.0
    %2334 = vmatpush2.msra.mxu0 0.0
    %2335 = vmatprep.subr.mxu0 0.0
    %2336 = vmatpush2.msra.mxu0 0.0
    %2337 = vmatprep.subr.mxu0 0.0
    %2338 = vmatpush2.msra.mxu0 0.0
    %2339 = vmatprep.subr.mxu0 0.0
    %2340 = vmatpush2.msra.mxu0 0.0
    %2341 = vmatprep.subr.mxu0 0.0
    %2342 = vmatpush2.msra.mxu0 0.0
    %2343 = vmatprep.subr.mxu0 0.0
    %2344 = vmatpush2.msra.mxu0 0.0
    %2345 = vmatprep.subr.mxu0 0.0
    %2346 = vmatpush2.msra.mxu0 0.0
    %2347 = vmatprep.subr.mxu0 0.0
    %2348 = vmatpush2.msra.mxu0 0.0
    %2349 = vmatprep.subr.mxu0 0.0
    %2350 = vmatpush2.msra.mxu0 0.0
    %2351 = vmatprep.subr.mxu0 0.0
    %2352 = vmatpush2.msra.mxu0 0.0
    %2353 = vmatprep.subr.mxu0 0.0
    %2354 = vmatpush2.msra.mxu0 0.0
    %2355 = vmatprep.subr.mxu0 0.0
    %2356 = vmatpush2.msra.mxu0 0.0
    %2357 = vmatprep.subr.mxu0 0.0
    %2358 = vmatpush2.msra.mxu0 0.0
    %2359 = vmatprep.mubr.f32.mxu0 0.0
    %v2360 = vand.u32 %v1990, 4294901760
    %2361 = vmatmul.mubr.f32.gmra.mxu0 %v2360
    %v2362 = vpop.f32.mrf.mxu0
    %v2363 = vadd.f32 %v2289, %v2362
    %v2364 = vpop.f32.mrf.mxu0
    %2365 = vdwg.mxu0
    %2366 = vmatprep.subr.mxu0 0.0
    %2367 = vmatpush1.msra.mxu0 0.0
    %2368 = vmatprep.subr.mxu0 0.0
    %2369 = vmatpush1.msra.mxu0 0.0
    %2370 = vmatprep.subr.mxu0 0.0
    %2371 = vmatpush1.msra.mxu0 0.0
    %2372 = vmatprep.subr.mxu0 0.0
    %2373 = vmatpush1.msra.mxu0 0.0
    %2374 = vmatprep.subr.mxu0 0.0
    %2375 = vmatpush1.msra.mxu0 0.0
    %2376 = vmatprep.subr.mxu0 0.0
    %2377 = vmatpush1.msra.mxu0 0.0
    %2378 = vmatprep.subr.mxu0 0.0
    %2379 = vmatpush1.msra.mxu0 0.0
    %2380 = vmatprep.subr.mxu0 0.0
    %2381 = vmatpush1.msra.mxu0 0.0
    %2382 = vmatprep.subr.mxu0 0.0
    %2383 = vmatpush1.msra.mxu0 0.0
    %2384 = vmatprep.subr.mxu0 0.0
    %2385 = vmatpush1.msra.mxu0 0.0
    %2386 = vmatprep.subr.mxu0 0.0
    %2387 = vmatpush1.msra.mxu0 0.0
    %2388 = vmatprep.subr.mxu0 0.0
    %2389 = vmatpush1.msra.mxu0 0.0
    %2390 = vmatprep.subr.mxu0 0.0
    %2391 = vmatpush1.msra.mxu0 0.0
    %2392 = vmatprep.subr.mxu0 0.0
    %2393 = vmatpush1.msra.mxu0 0.0
    %2394 = vmatprep.subr.mxu0 0.0
    %2395 = vmatpush1.msra.mxu0 0.0
    %2396 = vmatprep.subr.mxu0 0.0
    %v2397 = vand.u32 %v1987, 4294901760
    %2398 = vmatpush1.msra.mxu0 %v2397
    %2399 = vmatprep.subr.mxu0 0.0
    %2400 = vmatpush2.msra.mxu0 0.0
    %2401 = vmatprep.subr.mxu0 0.0
    %2402 = vmatpush2.msra.mxu0 0.0
    %2403 = vmatprep.subr.mxu0 0.0
    %2404 = vmatpush2.msra.mxu0 0.0
    %2405 = vmatprep.subr.mxu0 0.0
    %2406 = vmatpush2.msra.mxu0 0.0
    %2407 = vmatprep.subr.mxu0 0.0
    %2408 = vmatpush2.msra.mxu0 0.0
    %2409 = vmatprep.subr.mxu0 0.0
    %2410 = vmatpush2.msra.mxu0 0.0
    %2411 = vmatprep.subr.mxu0 0.0
    %2412 = vmatpush2.msra.mxu0 0.0
    %2413 = vmatprep.subr.mxu0 0.0
    %2414 = vmatpush2.msra.mxu0 0.0
    %2415 = vmatprep.subr.mxu0 0.0
    %2416 = vmatpush2.msra.mxu0 0.0
    %2417 = vmatprep.subr.mxu0 0.0
    %2418 = vmatpush2.msra.mxu0 0.0
    %2419 = vmatprep.subr.mxu0 0.0
    %2420 = vmatpush2.msra.mxu0 0.0
    %2421 = vmatprep.subr.mxu0 0.0
    %2422 = vmatpush2.msra.mxu0 0.0
    %2423 = vmatprep.subr.mxu0 0.0
    %2424 = vmatpush2.msra.mxu0 0.0
    %2425 = vmatprep.subr.mxu0 0.0
    %2426 = vmatpush2.msra.mxu0 0.0
    %2427 = vmatprep.subr.mxu0 0.0
    %2428 = vmatpush2.msra.mxu0 0.0
    %2429 = vmatprep.subr.mxu0 0.0
    %2430 = vmatpush2.msra.mxu0 0.0
    %2431 = vmatprep.mubr.f32.mxu0 0.0
    %v2432 = vand.u32 %v1990, 4294901760
    %2433 = vmatmul.mubr.f32.gmra.mxu0 %v2432
    %v2434 = vpop.f32.mrf.mxu0
    %v2435 = vadd.f32 %v2363, %v2434
    %v2436 = vpop.f32.mrf.mxu0
    %2437 = vdwg.mxu0
    %s2438 = scalar_lea.vmem [#allocation2], 8
    %2439 = vst.msk [vmem:[%s2438] sm:$0xff] %vm605, %v2435
    %s2440 = scalar_lea.vmem [#allocation4], 8
    %2441 = vst.msk [vmem:[%s2440] sm:$0xff] %vm1056, %v1985
    // Predicated region
    $region10: #{scaled_dot_product_attention.1} parent=1 // pred_check
      _
    $region11: #{scaled_dot_product_attention.1} parent=1 // pred_check_branch
      %2443 = sbr.rel (0) target = $region13
    $region12: #{scaled_dot_product_attention.1} parent=1 // pred_region
      %s2445 = ssub.s32 256, 256
      %2446 = vsyncadd [#allocation3], %s2445
      %s2447 = sshll.u32 [#allocation2], 4
      %s2448 = int_to_ptr.vmem [resolvable:$true] %s2447
      %2453 = dma.vmem_to_hbm [thread:$0]  %s2448, 256, %s2, [#allocation3], 128, 128, 8
    $region13: #{scaled_dot_product_attention.1} parent=1 // pred_fallthru
      _
    // Predicated region
    $region14: #{scaled_dot_product_attention.1} parent=1 // pred_check
      _
    $region15: #{scaled_dot_product_attention.1} parent=1 // pred_check_branch
      %2455 = sbr.rel (0) target = $region17
    $region16: #{scaled_dot_product_attention.1} parent=1 // pred_region
      %s2457 = ssub.s32 256, 256
      %2458 = vsyncadd [#allocation5], %s2457
      %s2459 = sshll.u32 [#allocation4], 4
      %s2460 = int_to_ptr.vmem [resolvable:$true] %s2459
      %2465 = dma.vmem_to_hbm [thread:$0]  %s2460, 256, %s3, [#allocation5], 128, 128, 8
    $region17: #{scaled_dot_product_attention.1} parent=1 // pred_fallthru
      _
    // Predicated region
    $region18: #{scaled_dot_product_attention.1} parent=1 // pred_check
      _
    $region19: #{scaled_dot_product_attention.1} parent=1 // pred_check_branch
      %2467 = sbr.rel (0) target = $region21
    $region20: #{scaled_dot_product_attention.1} parent=1 // pred_region
      %2468 = dma.done [#allocation3], 256
    $region21: #{scaled_dot_product_attention.1} parent=1 // pred_fallthru
      _
    // Predicated region
    $region22: #{scaled_dot_product_attention.1} parent=1 // pred_check
      _
    $region23: #{scaled_dot_product_attention.1} parent=1 // pred_check_branch
      %2470 = sbr.rel (0) target = $region25
    $region24: #{scaled_dot_product_attention.1} parent=1 // pred_region
      %2471 = dma.done [#allocation5], 256
    $region25: #{scaled_dot_product_attention.1} parent=1 // pred_fallthru
      _
    %2472 = vsyncpa [#allocation3], 1
    %2473 = vsyncpa [#allocation5], 1

</llo_original>
